<compile_context>
chip_gen: v7x
topology: tpu7x:2x2x1
jax: 0.10.0
libtpu: 0.0.40
codegen_flags: <defaults>
</compile_context>

<pallas_src>
import jax
import jax.numpy as jnp
from jax.experimental import pallas as pl
from jax.experimental.pallas import tpu as pltpu


def _round_up(x, m):
    return ((x + m - 1) // m) * m


def _edgeconv_kernel(p_ref, q_ref, i1_ref, i0_ref, b_ref, out_ref):
    # p_ref  : (1, Cout_p, Nrx_p)  (W_i - W_j) @ x   (compute dtype)
    # q_ref  : (1, Cout_p, Nry_p)  W_j @ y           (compute dtype)
    # i1_ref : (1, K, TN) int32    edge_index[1] (rows of P)
    # i0_ref : (1, K, TN) int32    edge_index[0] (rows of Q)
    # b_ref  : (Cout_p, 1) f32     bias
    # out_ref: (1, Cout_p, TN) f32
    k_neighbors = i1_ref.shape[1]
    tn = i1_ref.shape[2]
    nrx = p_ref.shape[2]
    nry = q_ref.shape[2]

    p = p_ref[0]        # (Cout_p, Nrx_p)
    q = q_ref[0]        # (Cout_p, Nry_p)
    idx1 = i1_ref[0]    # (K, TN)
    idx0 = i0_ref[0]    # (K, TN)
    cdt = p.dtype

    rows_x = jax.lax.broadcasted_iota(jnp.int32, (nrx, tn), 0)
    rows_y = jax.lax.broadcasted_iota(jnp.int32, (nry, tn), 0)

    def z_at(k):
        # One-hot gather matrices applied on the MXU: column t selects the
        # neighbor row for output node t.  0/1 are exact in bf16, so the only
        # rounding is in P/Q themselves; accumulation is f32.
        oh1 = jnp.where(rows_x == idx1[k:k + 1, :], 1.0, 0.0).astype(cdt)
        oh0 = jnp.where(rows_y == idx0[k:k + 1, :], 1.0, 0.0).astype(cdt)
        zi = jnp.dot(p, oh1, preferred_element_type=jnp.float32)
        zj = jnp.dot(q, oh0, preferred_element_type=jnp.float32)
        return zi + zj                                   # (Cout_p, TN) f32

    # Running max over neighbors; K is small & static -> unrolled.
    m = z_at(0)
    for k in range(1, k_neighbors):
        m = jnp.maximum(m, z_at(k))
    out_ref[0] = jnp.maximum(m + b_ref[...], 0.0).astype(out_ref.dtype)


def graph_convolution(x, edge_index, weight, bias, y=None, *,
                      max_tile_n=512, compute_dtype=jnp.bfloat16,
                      vmem_budget_bytes=40 * 1024 * 1024):
    """x: [B, C, Nr, 1] (NCHW), edge_index: [2, B, N, K] int,
    weight: [Cout, 2C] (squeezed 1x1 Conv2d weight), bias: [Cout].
    Returns [B, Cout, N, 1] float32."""
    B, C, Nrx, _ = x.shape
    _, _, N, K = edge_index.shape
    Cout = weight.shape[0]
    ys = x if y is None else y
    Nry = ys.shape[2]

    Cout_p = _round_up(Cout, 8)       # f32 sublane pad only (not 128)
    Nrx_p = _round_up(Nrx, 128)
    Nry_p = _round_up(Nry, 128)
    N_p = _round_up(N, 128)
    psize = jnp.dtype(compute_dtype).itemsize

    # ---- tiny dense projections in XLA (f32); the gather itself is in-kernel ----
    w = weight.astype(jnp.float32)
    w_i, w_j = w[:, :C], w[:, C:]
    xs = x[..., 0].astype(jnp.float32)                       # [B, C, Nrx]
    yf = ys[..., 0].astype(jnp.float32)                      # [B, C, Nry]
    p_full = jnp.einsum("oc,bcn->bon", w_i - w_j, xs)        # [B, Cout, Nrx]
    q_full = jnp.einsum("oc,bcn->bon", w_j, yf)              # [B, Cout, Nry]
    p_pad = jnp.pad(p_full, ((0, 0), (0, Cout_p - Cout), (0, Nrx_p - Nrx))
                    ).astype(compute_dtype)
    q_pad = jnp.pad(q_full, ((0, 0), (0, Cout_p - Cout), (0, Nry_p - Nry))
                    ).astype(compute_dtype)
    b_p = jnp.pad(bias.astype(jnp.float32), (0, Cout_p - Cout)).reshape(Cout_p, 1)

    # ---- indices laid out [B, K, N_p] (K on sublanes, N on lanes), int32 ----
    idx = edge_index.astype(jnp.int32)
    idx1 = jnp.pad(jnp.transpose(idx[1], (0, 2, 1)), ((0, 0), (0, 0), (0, N_p - N)))
    idx0 = jnp.pad(jnp.transpose(idx[0], (0, 2, 1)), ((0, 0), (0, 0), (0, N_p - N)))

    # ---- tile size: largest 128-multiple dividing N_p within the VMEM budget ----
    def vmem_needed(t):
        pipeline = 2 * (Cout_p * (Nrx_p + Nry_p) * psize     # P, Q (dbl-buffered)
                        + 2 * K * t * 4                      # idx1, idx0
                        + Cout_p * t * 4)                    # output tile
        nr_max = max(Nrx_p, Nry_p)
        temps = 2 * nr_max * t * psize + nr_max * t * 4 + 4 * Cout_p * t * 4
        return pipeline + temps + Cout_p * 4

    tn = max(128, (min(max_tile_n, N_p) // 128) * 128)
    while tn > 128 and (N_p % tn != 0 or vmem_needed(tn) > vmem_budget_bytes):
        tn -= 128
    n_tiles = N_p // tn

    flops = 2 * B * K * Cout_p * (Nrx_p + Nry_p) * N_p
    bytes_accessed = ((p_pad.size + q_pad.size) * psize
                      + (idx1.size + idx0.size) * 4
                      + b_p.size * 4 + B * Cout_p * N_p * 4)

    out = pl.pallas_call(
        _edgeconv_kernel,
        out_shape=jax.ShapeDtypeStruct((B, Cout_p, N_p), jnp.float32),
        grid_spec=pltpu.PrefetchScalarGridSpec(
            num_scalar_prefetch=0,
            grid=(B, n_tiles),
            in_specs=[
                pl.BlockSpec((1, Cout_p, Nrx_p), lambda b, n: (b, 0, 0)),   # P
                pl.BlockSpec((1, Cout_p, Nry_p), lambda b, n: (b, 0, 0)),   # Q
                pl.BlockSpec((1, K, tn), lambda b, n: (b, 0, n)),           # idx1
                pl.BlockSpec((1, K, tn), lambda b, n: (b, 0, n)),           # idx0
                pl.BlockSpec((Cout_p, 1), lambda b, n: (0, 0)),             # bias
            ],
            out_specs=pl.BlockSpec((1, Cout_p, tn), lambda b, n: (b, 0, n)),
        ),
        compiler_params=pltpu.CompilerParams(
            dimension_semantics=("parallel", "parallel"),
            vmem_limit_bytes=int(min(64 * 1024 * 1024,
                                     max(8 * 1024 * 1024, 2 * vmem_needed(tn)))),
        ),
        cost_estimate=pl.CostEstimate(
            flops=flops, transcendentals=0, bytes_accessed=bytes_accessed),
    )(p_pad, q_pad, idx1, idx0, b_p)

    # strip padding, back to PyTorch NCHW: [B, Cout, N, 1]
    # TODO(synk): emit bf16 here instead of f32 if downstream consumers allow it.
    return out[:, :Cout, :N][..., None]


def _reference(x, edge_index, weight, bias, y=None):
    # pure-JAX f32 reference of the PyTorch forward
    xs = x[..., 0]                                               # [B, C, Nr]
    ys = xs if y is None else y[..., 0]
    x_i = jax.vmap(lambda f, i: f[:, i])(xs, edge_index[1])      # [B, C, N, K]
    x_j = jax.vmap(lambda f, i: f[:, i])(ys, edge_index[0])
    feat = jnp.concatenate([x_i, x_j - x_i], axis=1)             # [B, 2C, N, K]
    z = jnp.einsum("oc,bcnk->bonk", weight, feat) + bias[None, :, None, None]
    z = jnp.maximum(z, 0.0)
    return jnp.max(z, axis=-1, keepdims=True)                    # [B, Cout, N, 1]


if __name__ == "__main__":
    B, C, N, K = 2, 4, 16, 8
    Cout = 8

    key = jax.random.PRNGKey(0)
    kx, ky, ki, kw, kb = jax.random.split(key, 5)

    x = jax.random.normal(kx, (B, C, N, 1), dtype=jnp.float32)
    y = jax.random.normal(ky, (B, C, N, 1), dtype=jnp.float32)
    edge_index = jax.random.randint(ki, (2, B, N, K), 0, N, dtype=jnp.int32)
    weight = jax.random.normal(kw, (Cout, 2 * C), dtype=jnp.float32) * 0.1
    bias = jax.random.normal(kb, (Cout,), dtype=jnp.float32) * 0.1

    # --- x-only path ---
    ref = jax.block_until_ready(_reference(x, edge_index, weight, bias))

    out_f32 = jax.block_until_ready(
        graph_convolution(x, edge_index, weight, bias, compute_dtype=jnp.float32))
    assert out_f32.shape == (B, Cout, N, 1), out_f32.shape
    assert jnp.allclose(out_f32, ref, atol=1e-2, rtol=1e-2), \
        float(jnp.max(jnp.abs(out_f32 - ref)))

    out_bf16 = jax.block_until_ready(graph_convolution(x, edge_index, weight, bias))
    assert out_bf16.shape == (B, Cout, N, 1), out_bf16.shape
    assert jnp.allclose(out_bf16, ref, atol=5e-2, rtol=5e-2), \
        float(jnp.max(jnp.abs(out_bf16 - ref)))

    # --- bipartite path (y provided) ---
    ref_y = jax.block_until_ready(_reference(x, edge_index, weight, bias, y=y))
    out_y = jax.block_until_ready(
        graph_convolution(x, edge_index, weight, bias, y=y,
                          compute_dtype=jnp.float32))
    assert jnp.allclose(out_y, ref_y, atol=1e-2, rtol=1e-2), \
        float(jnp.max(jnp.abs(out_y - ref_y)))

    print("KERNEL_OK")
</pallas_src>

<mosaic_0001>
module attributes {stable_mosaic.version = 11 : i64} {
  func.func @_edgeconv_kernel(%arg0: i32, %arg1: i32, %arg2: memref<1x8x128xf32, #tpu.memory_space<vmem>>, %arg3: memref<1x8x128xf32, #tpu.memory_space<vmem>>, %arg4: memref<1x8x128xi32, #tpu.memory_space<vmem>>, %arg5: memref<1x8x128xi32, #tpu.memory_space<vmem>>, %arg6: memref<8x1xf32, #tpu.memory_space<vmem>>, %arg7: memref<1x8x128xf32, #tpu.memory_space<vmem>>) attributes {dimension_semantics = [#tpu.dimension_semantics<parallel>, #tpu.dimension_semantics<parallel>], iteration_bounds = array<i64: 2, 1>, scalar_prefetch = 0 : i64, scratch_operands = 0 : i64, tpu.core_type = #tpu.core_type<tc>, window_params = [{transform_indices = @transform_0, window_bounds = array<i64: 1, 8, 128>}, {transform_indices = @transform_1, window_bounds = array<i64: 1, 8, 128>}, {transform_indices = @transform_2, window_bounds = array<i64: 1, 8, 128>}, {transform_indices = @transform_3, window_bounds = array<i64: 1, 8, 128>}, {pipeline_mode = #tpu.pipeline_mode<synchronous>, transform_indices = @transform_4, window_bounds = array<i64: 8, 1>}, {transform_indices = @transform_5, window_bounds = array<i64: 1, 8, 128>}]} {
    %c0 = arith.constant 0 : index
    %c0_0 = arith.constant 0 : index
    %c0_1 = arith.constant 0 : index
    %0 = vector.load %arg2[%c0, %c0_0, %c0_1] : memref<1x8x128xf32, #tpu.memory_space<vmem>>, vector<1x8x128xf32>
    %1 = vector.shape_cast %0 : vector<1x8x128xf32> to vector<8x128xf32>
    %c0_2 = arith.constant 0 : index
    %c0_3 = arith.constant 0 : index
    %c0_4 = arith.constant 0 : index
    %2 = vector.load %arg3[%c0_2, %c0_3, %c0_4] : memref<1x8x128xf32, #tpu.memory_space<vmem>>, vector<1x8x128xf32>
    %3 = vector.shape_cast %2 : vector<1x8x128xf32> to vector<8x128xf32>
    %c0_5 = arith.constant 0 : index
    %c0_6 = arith.constant 0 : index
    %c0_7 = arith.constant 0 : index
    %4 = vector.load %arg4[%c0_5, %c0_6, %c0_7] : memref<1x8x128xi32, #tpu.memory_space<vmem>>, vector<1x8x128xi32>
    %5 = vector.shape_cast %4 : vector<1x8x128xi32> to vector<8x128xi32>
    %c0_8 = arith.constant 0 : index
    %c0_9 = arith.constant 0 : index
    %c0_10 = arith.constant 0 : index
    %6 = vector.load %arg5[%c0_8, %c0_9, %c0_10] : memref<1x8x128xi32, #tpu.memory_space<vmem>>, vector<1x8x128xi32>
    %7 = vector.shape_cast %6 : vector<1x8x128xi32> to vector<8x128xi32>
    %8 = tpu.iota {dimensions = array<i32: 0>} : vector<128x128xi32>
    %9 = tpu.iota {dimensions = array<i32: 0>} : vector<128x128xi32>
    %10 = vector.extract_strided_slice %5 {offsets = [0, 0], sizes = [1, 128], strides = [1, 1]} : vector<8x128xi32> to vector<1x128xi32>
    %11 = vector.broadcast %10 : vector<1x128xi32> to vector<128x128xi32>
    %12 = arith.cmpi eq, %8, %11 : vector<128x128xi32>
    %cst = arith.constant 1.000000e+00 : f32
    %cst_11 = arith.constant 0.000000e+00 : f32
    %13 = vector.broadcast %cst : f32 to vector<128x128xf32>
    %14 = vector.broadcast %cst_11 : f32 to vector<128x128xf32>
    %15 = arith.select %12, %13, %14 : vector<128x128xi1>, vector<128x128xf32>
    %16 = vector.extract_strided_slice %7 {offsets = [0, 0], sizes = [1, 128], strides = [1, 1]} : vector<8x128xi32> to vector<1x128xi32>
    %17 = vector.broadcast %16 : vector<1x128xi32> to vector<128x128xi32>
    %18 = arith.cmpi eq, %9, %17 : vector<128x128xi32>
    %cst_12 = arith.constant 1.000000e+00 : f32
    %cst_13 = arith.constant 0.000000e+00 : f32
    %19 = vector.broadcast %cst_12 : f32 to vector<128x128xf32>
    %20 = vector.broadcast %cst_13 : f32 to vector<128x128xf32>
    %21 = arith.select %18, %19, %20 : vector<128x128xi1>, vector<128x128xf32>
    %cst_14 = arith.constant dense<0.000000e+00> : vector<8x128xf32>
    %22 = tpu.matmul %1, %15, %cst_14 {dimension_numbers = #tpu.dot_dimension_numbers<[1], [0], [0], [1], [0, 0, 1, 1], [], []>} : vector<8x128xf32>, vector<128x128xf32>, vector<8x128xf32> -> vector<8x128xf32>
    %cst_15 = arith.constant dense<0.000000e+00> : vector<8x128xf32>
    %23 = tpu.matmul %3, %21, %cst_15 {dimension_numbers = #tpu.dot_dimension_numbers<[1], [0], [0], [1], [0, 0, 1, 1], [], []>} : vector<8x128xf32>, vector<128x128xf32>, vector<8x128xf32> -> vector<8x128xf32>
    %24 = arith.addf %22, %23 : vector<8x128xf32>
    %25 = vector.extract_strided_slice %5 {offsets = [1, 0], sizes = [1, 128], strides = [1, 1]} : vector<8x128xi32> to vector<1x128xi32>
    %26 = vector.broadcast %25 : vector<1x128xi32> to vector<128x128xi32>
    %27 = arith.cmpi eq, %8, %26 : vector<128x128xi32>
    %cst_16 = arith.constant 1.000000e+00 : f32
    %cst_17 = arith.constant 0.000000e+00 : f32
    %28 = vector.broadcast %cst_16 : f32 to vector<128x128xf32>
    %29 = vector.broadcast %cst_17 : f32 to vector<128x128xf32>
    %30 = arith.select %27, %28, %29 : vector<128x128xi1>, vector<128x128xf32>
    %31 = vector.extract_strided_slice %7 {offsets = [1, 0], sizes = [1, 128], strides = [1, 1]} : vector<8x128xi32> to vector<1x128xi32>
    %32 = vector.broadcast %31 : vector<1x128xi32> to vector<128x128xi32>
    %33 = arith.cmpi eq, %9, %32 : vector<128x128xi32>
    %cst_18 = arith.constant 1.000000e+00 : f32
    %cst_19 = arith.constant 0.000000e+00 : f32
    %34 = vector.broadcast %cst_18 : f32 to vector<128x128xf32>
    %35 = vector.broadcast %cst_19 : f32 to vector<128x128xf32>
    %36 = arith.select %33, %34, %35 : vector<128x128xi1>, vector<128x128xf32>
    %cst_20 = arith.constant dense<0.000000e+00> : vector<8x128xf32>
    %37 = tpu.matmul %1, %30, %cst_20 {dimension_numbers = #tpu.dot_dimension_numbers<[1], [0], [0], [1], [0, 0, 1, 1], [], []>} : vector<8x128xf32>, vector<128x128xf32>, vector<8x128xf32> -> vector<8x128xf32>
    %cst_21 = arith.constant dense<0.000000e+00> : vector<8x128xf32>
    %38 = tpu.matmul %3, %36, %cst_21 {dimension_numbers = #tpu.dot_dimension_numbers<[1], [0], [0], [1], [0, 0, 1, 1], [], []>} : vector<8x128xf32>, vector<128x128xf32>, vector<8x128xf32> -> vector<8x128xf32>
    %39 = arith.addf %37, %38 : vector<8x128xf32>
    %40 = arith.maximumf %24, %39 : vector<8x128xf32>
    %41 = vector.extract_strided_slice %5 {offsets = [2, 0], sizes = [1, 128], strides = [1, 1]} : vector<8x128xi32> to vector<1x128xi32>
    %42 = vector.broadcast %41 : vector<1x128xi32> to vector<128x128xi32>
    %43 = arith.cmpi eq, %8, %42 : vector<128x128xi32>
    %cst_22 = arith.constant 1.000000e+00 : f32
    %cst_23 = arith.constant 0.000000e+00 : f32
    %44 = vector.broadcast %cst_22 : f32 to vector<128x128xf32>
    %45 = vector.broadcast %cst_23 : f32 to vector<128x128xf32>
    %46 = arith.select %43, %44, %45 : vector<128x128xi1>, vector<128x128xf32>
    %47 = vector.extract_strided_slice %7 {offsets = [2, 0], sizes = [1, 128], strides = [1, 1]} : vector<8x128xi32> to vector<1x128xi32>
    %48 = vector.broadcast %47 : vector<1x128xi32> to vector<128x128xi32>
    %49 = arith.cmpi eq, %9, %48 : vector<128x128xi32>
    %cst_24 = arith.constant 1.000000e+00 : f32
    %cst_25 = arith.constant 0.000000e+00 : f32
    %50 = vector.broadcast %cst_24 : f32 to vector<128x128xf32>
    %51 = vector.broadcast %cst_25 : f32 to vector<128x128xf32>
    %52 = arith.select %49, %50, %51 : vector<128x128xi1>, vector<128x128xf32>
    %cst_26 = arith.constant dense<0.000000e+00> : vector<8x128xf32>
    %53 = tpu.matmul %1, %46, %cst_26 {dimension_numbers = #tpu.dot_dimension_numbers<[1], [0], [0], [1], [0, 0, 1, 1], [], []>} : vector<8x128xf32>, vector<128x128xf32>, vector<8x128xf32> -> vector<8x128xf32>
    %cst_27 = arith.constant dense<0.000000e+00> : vector<8x128xf32>
    %54 = tpu.matmul %3, %52, %cst_27 {dimension_numbers = #tpu.dot_dimension_numbers<[1], [0], [0], [1], [0, 0, 1, 1], [], []>} : vector<8x128xf32>, vector<128x128xf32>, vector<8x128xf32> -> vector<8x128xf32>
    %55 = arith.addf %53, %54 : vector<8x128xf32>
    %56 = arith.maximumf %40, %55 : vector<8x128xf32>
    %57 = vector.extract_strided_slice %5 {offsets = [3, 0], sizes = [1, 128], strides = [1, 1]} : vector<8x128xi32> to vector<1x128xi32>
    %58 = vector.broadcast %57 : vector<1x128xi32> to vector<128x128xi32>
    %59 = arith.cmpi eq, %8, %58 : vector<128x128xi32>
    %cst_28 = arith.constant 1.000000e+00 : f32
    %cst_29 = arith.constant 0.000000e+00 : f32
    %60 = vector.broadcast %cst_28 : f32 to vector<128x128xf32>
    %61 = vector.broadcast %cst_29 : f32 to vector<128x128xf32>
    %62 = arith.select %59, %60, %61 : vector<128x128xi1>, vector<128x128xf32>
    %63 = vector.extract_strided_slice %7 {offsets = [3, 0], sizes = [1, 128], strides = [1, 1]} : vector<8x128xi32> to vector<1x128xi32>
    %64 = vector.broadcast %63 : vector<1x128xi32> to vector<128x128xi32>
    %65 = arith.cmpi eq, %9, %64 : vector<128x128xi32>
    %cst_30 = arith.constant 1.000000e+00 : f32
    %cst_31 = arith.constant 0.000000e+00 : f32
    %66 = vector.broadcast %cst_30 : f32 to vector<128x128xf32>
    %67 = vector.broadcast %cst_31 : f32 to vector<128x128xf32>
    %68 = arith.select %65, %66, %67 : vector<128x128xi1>, vector<128x128xf32>
    %cst_32 = arith.constant dense<0.000000e+00> : vector<8x128xf32>
    %69 = tpu.matmul %1, %62, %cst_32 {dimension_numbers = #tpu.dot_dimension_numbers<[1], [0], [0], [1], [0, 0, 1, 1], [], []>} : vector<8x128xf32>, vector<128x128xf32>, vector<8x128xf32> -> vector<8x128xf32>
    %cst_33 = arith.constant dense<0.000000e+00> : vector<8x128xf32>
    %70 = tpu.matmul %3, %68, %cst_33 {dimension_numbers = #tpu.dot_dimension_numbers<[1], [0], [0], [1], [0, 0, 1, 1], [], []>} : vector<8x128xf32>, vector<128x128xf32>, vector<8x128xf32> -> vector<8x128xf32>
    %71 = arith.addf %69, %70 : vector<8x128xf32>
    %72 = arith.maximumf %56, %71 : vector<8x128xf32>
    %73 = vector.extract_strided_slice %5 {offsets = [4, 0], sizes = [1, 128], strides = [1, 1]} : vector<8x128xi32> to vector<1x128xi32>
    %74 = vector.broadcast %73 : vector<1x128xi32> to vector<128x128xi32>
    %75 = arith.cmpi eq, %8, %74 : vector<128x128xi32>
    %cst_34 = arith.constant 1.000000e+00 : f32
    %cst_35 = arith.constant 0.000000e+00 : f32
    %76 = vector.broadcast %cst_34 : f32 to vector<128x128xf32>
    %77 = vector.broadcast %cst_35 : f32 to vector<128x128xf32>
    %78 = arith.select %75, %76, %77 : vector<128x128xi1>, vector<128x128xf32>
    %79 = vector.extract_strided_slice %7 {offsets = [4, 0], sizes = [1, 128], strides = [1, 1]} : vector<8x128xi32> to vector<1x128xi32>
    %80 = vector.broadcast %79 : vector<1x128xi32> to vector<128x128xi32>
    %81 = arith.cmpi eq, %9, %80 : vector<128x128xi32>
    %cst_36 = arith.constant 1.000000e+00 : f32
    %cst_37 = arith.constant 0.000000e+00 : f32
    %82 = vector.broadcast %cst_36 : f32 to vector<128x128xf32>
    %83 = vector.broadcast %cst_37 : f32 to vector<128x128xf32>
    %84 = arith.select %81, %82, %83 : vector<128x128xi1>, vector<128x128xf32>
    %cst_38 = arith.constant dense<0.000000e+00> : vector<8x128xf32>
    %85 = tpu.matmul %1, %78, %cst_38 {dimension_numbers = #tpu.dot_dimension_numbers<[1], [0], [0], [1], [0, 0, 1, 1], [], []>} : vector<8x128xf32>, vector<128x128xf32>, vector<8x128xf32> -> vector<8x128xf32>
    %cst_39 = arith.constant dense<0.000000e+00> : vector<8x128xf32>
    %86 = tpu.matmul %3, %84, %cst_39 {dimension_numbers = #tpu.dot_dimension_numbers<[1], [0], [0], [1], [0, 0, 1, 1], [], []>} : vector<8x128xf32>, vector<128x128xf32>, vector<8x128xf32> -> vector<8x128xf32>
    %87 = arith.addf %85, %86 : vector<8x128xf32>
    %88 = arith.maximumf %72, %87 : vector<8x128xf32>
    %89 = vector.extract_strided_slice %5 {offsets = [5, 0], sizes = [1, 128], strides = [1, 1]} : vector<8x128xi32> to vector<1x128xi32>
    %90 = vector.broadcast %89 : vector<1x128xi32> to vector<128x128xi32>
    %91 = arith.cmpi eq, %8, %90 : vector<128x128xi32>
    %cst_40 = arith.constant 1.000000e+00 : f32
    %cst_41 = arith.constant 0.000000e+00 : f32
    %92 = vector.broadcast %cst_40 : f32 to vector<128x128xf32>
    %93 = vector.broadcast %cst_41 : f32 to vector<128x128xf32>
    %94 = arith.select %91, %92, %93 : vector<128x128xi1>, vector<128x128xf32>
    %95 = vector.extract_strided_slice %7 {offsets = [5, 0], sizes = [1, 128], strides = [1, 1]} : vector<8x128xi32> to vector<1x128xi32>
    %96 = vector.broadcast %95 : vector<1x128xi32> to vector<128x128xi32>
    %97 = arith.cmpi eq, %9, %96 : vector<128x128xi32>
    %cst_42 = arith.constant 1.000000e+00 : f32
    %cst_43 = arith.constant 0.000000e+00 : f32
    %98 = vector.broadcast %cst_42 : f32 to vector<128x128xf32>
    %99 = vector.broadcast %cst_43 : f32 to vector<128x128xf32>
    %100 = arith.select %97, %98, %99 : vector<128x128xi1>, vector<128x128xf32>
    %cst_44 = arith.constant dense<0.000000e+00> : vector<8x128xf32>
    %101 = tpu.matmul %1, %94, %cst_44 {dimension_numbers = #tpu.dot_dimension_numbers<[1], [0], [0], [1], [0, 0, 1, 1], [], []>} : vector<8x128xf32>, vector<128x128xf32>, vector<8x128xf32> -> vector<8x128xf32>
    %cst_45 = arith.constant dense<0.000000e+00> : vector<8x128xf32>
    %102 = tpu.matmul %3, %100, %cst_45 {dimension_numbers = #tpu.dot_dimension_numbers<[1], [0], [0], [1], [0, 0, 1, 1], [], []>} : vector<8x128xf32>, vector<128x128xf32>, vector<8x128xf32> -> vector<8x128xf32>
    %103 = arith.addf %101, %102 : vector<8x128xf32>
    %104 = arith.maximumf %88, %103 : vector<8x128xf32>
    %105 = vector.extract_strided_slice %5 {offsets = [6, 0], sizes = [1, 128], strides = [1, 1]} : vector<8x128xi32> to vector<1x128xi32>
    %106 = vector.broadcast %105 : vector<1x128xi32> to vector<128x128xi32>
    %107 = arith.cmpi eq, %8, %106 : vector<128x128xi32>
    %cst_46 = arith.constant 1.000000e+00 : f32
    %cst_47 = arith.constant 0.000000e+00 : f32
    %108 = vector.broadcast %cst_46 : f32 to vector<128x128xf32>
    %109 = vector.broadcast %cst_47 : f32 to vector<128x128xf32>
    %110 = arith.select %107, %108, %109 : vector<128x128xi1>, vector<128x128xf32>
    %111 = vector.extract_strided_slice %7 {offsets = [6, 0], sizes = [1, 128], strides = [1, 1]} : vector<8x128xi32> to vector<1x128xi32>
    %112 = vector.broadcast %111 : vector<1x128xi32> to vector<128x128xi32>
    %113 = arith.cmpi eq, %9, %112 : vector<128x128xi32>
    %cst_48 = arith.constant 1.000000e+00 : f32
    %cst_49 = arith.constant 0.000000e+00 : f32
    %114 = vector.broadcast %cst_48 : f32 to vector<128x128xf32>
    %115 = vector.broadcast %cst_49 : f32 to vector<128x128xf32>
    %116 = arith.select %113, %114, %115 : vector<128x128xi1>, vector<128x128xf32>
    %cst_50 = arith.constant dense<0.000000e+00> : vector<8x128xf32>
    %117 = tpu.matmul %1, %110, %cst_50 {dimension_numbers = #tpu.dot_dimension_numbers<[1], [0], [0], [1], [0, 0, 1, 1], [], []>} : vector<8x128xf32>, vector<128x128xf32>, vector<8x128xf32> -> vector<8x128xf32>
    %cst_51 = arith.constant dense<0.000000e+00> : vector<8x128xf32>
    %118 = tpu.matmul %3, %116, %cst_51 {dimension_numbers = #tpu.dot_dimension_numbers<[1], [0], [0], [1], [0, 0, 1, 1], [], []>} : vector<8x128xf32>, vector<128x128xf32>, vector<8x128xf32> -> vector<8x128xf32>
    %119 = arith.addf %117, %118 : vector<8x128xf32>
    %120 = arith.maximumf %104, %119 : vector<8x128xf32>
    %121 = vector.extract_strided_slice %5 {offsets = [7, 0], sizes = [1, 128], strides = [1, 1]} : vector<8x128xi32> to vector<1x128xi32>
    %122 = vector.broadcast %121 : vector<1x128xi32> to vector<128x128xi32>
    %123 = arith.cmpi eq, %8, %122 : vector<128x128xi32>
    %cst_52 = arith.constant 1.000000e+00 : f32
    %cst_53 = arith.constant 0.000000e+00 : f32
    %124 = vector.broadcast %cst_52 : f32 to vector<128x128xf32>
    %125 = vector.broadcast %cst_53 : f32 to vector<128x128xf32>
    %126 = arith.select %123, %124, %125 : vector<128x128xi1>, vector<128x128xf32>
    %127 = vector.extract_strided_slice %7 {offsets = [7, 0], sizes = [1, 128], strides = [1, 1]} : vector<8x128xi32> to vector<1x128xi32>
    %128 = vector.broadcast %127 : vector<1x128xi32> to vector<128x128xi32>
    %129 = arith.cmpi eq, %9, %128 : vector<128x128xi32>
    %cst_54 = arith.constant 1.000000e+00 : f32
    %cst_55 = arith.constant 0.000000e+00 : f32
    %130 = vector.broadcast %cst_54 : f32 to vector<128x128xf32>
    %131 = vector.broadcast %cst_55 : f32 to vector<128x128xf32>
    %132 = arith.select %129, %130, %131 : vector<128x128xi1>, vector<128x128xf32>
    %cst_56 = arith.constant dense<0.000000e+00> : vector<8x128xf32>
    %133 = tpu.matmul %1, %126, %cst_56 {dimension_numbers = #tpu.dot_dimension_numbers<[1], [0], [0], [1], [0, 0, 1, 1], [], []>} : vector<8x128xf32>, vector<128x128xf32>, vector<8x128xf32> -> vector<8x128xf32>
    %cst_57 = arith.constant dense<0.000000e+00> : vector<8x128xf32>
    %134 = tpu.matmul %3, %132, %cst_57 {dimension_numbers = #tpu.dot_dimension_numbers<[1], [0], [0], [1], [0, 0, 1, 1], [], []>} : vector<8x128xf32>, vector<128x128xf32>, vector<8x128xf32> -> vector<8x128xf32>
    %135 = arith.addf %133, %134 : vector<8x128xf32>
    %136 = arith.maximumf %120, %135 : vector<8x128xf32>
    %c0_58 = arith.constant 0 : index
    %c0_59 = arith.constant 0 : index
    %137 = vector.load %arg6[%c0_58, %c0_59] : memref<8x1xf32, #tpu.memory_space<vmem>>, vector<8x1xf32>
    %138 = vector.broadcast %137 : vector<8x1xf32> to vector<8x128xf32>
    %139 = arith.addf %136, %138 : vector<8x128xf32>
    %cst_60 = arith.constant 0.000000e+00 : f32
    %140 = vector.broadcast %cst_60 : f32 to vector<8x128xf32>
    %141 = arith.maximumf %139, %140 : vector<8x128xf32>
    %c0_61 = arith.constant 0 : index
    %c0_62 = arith.constant 0 : index
    %c0_63 = arith.constant 0 : index
    %142 = vector.load %arg7[%c0_61, %c0_62, %c0_63] : memref<1x8x128xf32, #tpu.memory_space<vmem>>, vector<1x8x128xf32>
    %143 = vector.shape_cast %142 : vector<1x8x128xf32> to vector<8x128xf32>
    %144 = vector.shape_cast %141 : vector<8x128xf32> to vector<1x8x128xf32>
    tpu.vector_store %arg7[%c0_61, %c0_62, %c0_63], %144 {strides = array<i32>} : memref<1x8x128xf32, #tpu.memory_space<vmem>>, vector<1x8x128xf32>,
    return
  }
  func.func @transform_0(%arg0: i32, %arg1: i32) -> (i32, i32, i32) {
    %c0_i32 = arith.constant 0 : i32
    %c0_i32_0 = arith.constant 0 : i32
    %c0_i32_1 = arith.constant 0 : i32
    return %arg0, %c0_i32, %c0_i32_0 : i32, i32, i32
  }
  func.func @transform_1(%arg0: i32, %arg1: i32) -> (i32, i32, i32) {
    %c0_i32 = arith.constant 0 : i32
    %c0_i32_0 = arith.constant 0 : i32
    %c0_i32_1 = arith.constant 0 : i32
    return %arg0, %c0_i32, %c0_i32_0 : i32, i32, i32
  }
  func.func @transform_2(%arg0: i32, %arg1: i32) -> (i32, i32, i32) {
    %c0_i32 = arith.constant 0 : i32
    %c0_i32_0 = arith.constant 0 : i32
    return %arg0, %c0_i32, %arg1 : i32, i32, i32
  }
  func.func @transform_3(%arg0: i32, %arg1: i32) -> (i32, i32, i32) {
    %c0_i32 = arith.constant 0 : i32
    %c0_i32_0 = arith.constant 0 : i32
    return %arg0, %c0_i32, %arg1 : i32, i32, i32
  }
  func.func @transform_4(%arg0: i32, %arg1: i32) -> (i32, i32) {
    %c0_i32 = arith.constant 0 : i32
    %c0_i32_0 = arith.constant 0 : i32
    %c0_i32_1 = arith.constant 0 : i32
    return %c0_i32, %c0_i32_0 : i32, i32
  }
  func.func @transform_5(%arg0: i32, %arg1: i32) -> (i32, i32, i32) {
    %c0_i32 = arith.constant 0 : i32
    %c0_i32_0 = arith.constant 0 : i32
    return %arg0, %c0_i32, %arg1 : i32, i32, i32
  }
}

</mosaic_0001>

<llo_original>
// kernel: tpu_custom_call.1
$region0: #{tpu_custom_call.1}
  #allocation0 [shape = 'u32[]', space=smem, size = 0x4, offset = 0x4, fixed_abs, tag = 'smem constant byte address 0x4 - core index']
  #allocation1 [shape = 'u32[144,128]{1,0:T(1,128)}', space=vmem, size = 0x12000, scoped, tag = 'internal scratch']
  %s0 = inlined_call_operand.hbm [shape: f32[2,8,128], index: 0, kind: input, shape index: {}]
  %s1 = inlined_call_operand.hbm [shape: f32[2,8,128], index: 1, kind: input, shape index: {}]
  %s2 = inlined_call_operand.vmem [shape: s32[2,8,128], index: 2, kind: input, shape index: {}]
  %s3 = inlined_call_operand.hbm [shape: s32[2,8,128], index: 3, kind: input, shape index: {}]
  %s4 = inlined_call_operand.vmem [shape: f32[8,1], index: 4, kind: input, shape index: {}]
  %s5 = inlined_call_operand.hbm [shape: f32[2,8,128], index: 5, kind: output, shape index: {}]
  %s6 = sld [smem:[#allocation0]]
  $region65: #{tpu_custom_call.1} parent=0
    _
  %s8 = ssub.s32 1, %s6
  %s9 = scalar_select 0, %s8, %s6
  $region1: #{tpu_custom_call.1} parent=0
    #allocation2 [shape = 'u8[8192]{0}', space=vmem, size = 0x2000, scoped, tag = 'input window, operand 0']
    #allocation3 [shape = 's32[2]{0}', space=sflag, size = 0x8, scoped, tag = 'scoped memory for tpu_custom_call.1']
    #allocation4 [shape = 's32[2]{0}', space=sflag, size = 0x8, scoped, tag = 'scoped memory for tpu_custom_call.1']
    #allocation5 [shape = 'u8[8192]{0}', space=vmem, size = 0x2000, scoped, tag = 'input window, operand 1']
    #allocation6 [shape = 's32[2]{0}', space=sflag, size = 0x8, scoped, tag = 'scoped memory for tpu_custom_call.1']
    #allocation7 [shape = 'u8[8192]{0}', space=vmem, size = 0x2000, scoped, tag = 'input window, operand 3']
    #allocation8 [shape = 'u8[8192]{0}', space=vmem, size = 0x2000, scoped, tag = 'output window, operand 0']
    %10 = vsyncpa [#allocation3], 0
    %s11 = scalar_lea.sflag [#allocation3], 1
    %12 = vsyncpa %s11, 0
    %13 = vsyncpa [#allocation6], 0
    %s14 = scalar_lea.sflag [#allocation6], 1
    %15 = vsyncpa %s14, 0
    %16 = vsyncpa [#allocation4], 0
    %s17 = scalar_lea.sflag [#allocation4], 1
    %18 = vsyncpa %s17, 0
    loop: start=0, step=1, limit=4
    $region2: #{tpu_custom_call.1} parent=1 // loop_pre_header
      _
    $region3: #{tpu_custom_call.1} parent=1 // loop_header
      %s20 = sphi 0, %s24
      %p21 = scmp.ge.s32.totalorder %s20, 4
      %s27 = sphi 0, %s39
      %s28 = sphi 0, %s35
      %s29 = sphi 0, %s27
      %s30 = sphi 0, %s28
      %s31 = sphi 0, %s29
      %s32 = sphi 0, %s30
      %s42 = sphi 0, %s44
      %s45 = sphi 0, %s42
      %s46 = sphi 0, %s45
      %s62 = sphi 0, %s46
      %s68 = sphi 0, %s70
      %s71 = sphi 0, %s68
      %s72 = sphi 0, %s71
      %s88 = sphi 0, %s72
      %s96 = sphi 0, %s98
      %s99 = sphi 0, %s96
      %s100 = sphi 0, %s99
      %s116 = sphi 0, %s100
      %s124 = sphi 0, %s126
      %s127 = sphi 0, %s124
      %s128 = sphi 0, %s127
      %s144 = sphi 0, %s128
      %s148 = sphi 0, %s148
      %s150 = sphi 0, %s148
      %s151 = sphi 0, %s150
      %s165 = sphi 0, %s151
      %s173 = sphi 0, %s175
      %s176 = sphi 0, %s173
      %s177 = sphi 0, %s176
      %s193 = sphi 0, %s177
    $region4: #{tpu_custom_call.1} parent=1 // loop_header_branch
      %23 = sbr.rel (%p21) target = $region8
    $region5: #{tpu_custom_call.1} parent=1 // loop_body
      %s25 = ssub.s32 %s20, 1
      %s26 = ssub.s32 %s20, 2
      %s33 = sadd.s32 1, %s28
      %p34 = scmp.ge.s32.totalorder %s33, 1
      %s35 = scalar_select %p34, 0, %s33
      %s36 = sadd.s32 1, %s27
      %s37 = scalar_select %p34, %s36, %s27
      %p38 = scmp.ge.s32.totalorder %s37, 2
      %s39 = scalar_select %p38, 0, %s37
      %s40 = ssub.s32 %s27, %s39
      %p41 = scmp.eq.s32.totalorder %s40, 0
      %s43 = sadd.s32 %s42, 1
      %s44 = scalar_select %p41, %s42, %s43
      %p47 = pneg %p41
      %p48 = scmp.eq.s32.totalorder %s20, 1
      %p49 = por %p47, %p48
      %p50 = scmp.ne.s32.totalorder %s42, %s45
      %p51 = scmp.eq.s32.totalorder %s20, 0
      %p52 = por %p50, %p51
      %p53 = scmp.ne.s32.totalorder %s42, %s45
      %p54 = scmp.eq.s32.totalorder %s25, 1
      %p55 = por %p53, %p54
      %p56 = scmp.ne.s32.totalorder %s45, %s46
      %p57 = scmp.eq.s32.totalorder %s25, 0
      %p58 = por %p56, %p57
      %p59 = scmp.ne.s32.totalorder %s45, %s46
      %p60 = scmp.eq.s32.totalorder %s26, 1
      %p61 = por %p59, %p60
      %p63 = scmp.ne.s32.totalorder %s46, %s62
      %p64 = scmp.eq.s32.totalorder %s26, 0
      %p65 = por %p63, %p64
      %s66 = ssub.s32 %s27, %s39
      %p67 = scmp.eq.s32.totalorder %s66, 0
      %s69 = sadd.s32 %s68, 1
      %s70 = scalar_select %p67, %s68, %s69
      %p73 = pneg %p67
      %p74 = scmp.eq.s32.totalorder %s20, 1
      %p75 = por %p73, %p74
      %p76 = scmp.ne.s32.totalorder %s68, %s71
      %p77 = scmp.eq.s32.totalorder %s20, 0
      %p78 = por %p76, %p77
      %p79 = scmp.ne.s32.totalorder %s68, %s71
      %p80 = scmp.eq.s32.totalorder %s25, 1
      %p81 = por %p79, %p80
      %p82 = scmp.ne.s32.totalorder %s71, %s72
      %p83 = scmp.eq.s32.totalorder %s25, 0
      %p84 = por %p82, %p83
      %p85 = scmp.ne.s32.totalorder %s71, %s72
      %p86 = scmp.eq.s32.totalorder %s26, 1
      %p87 = por %p85, %p86
      %p89 = scmp.ne.s32.totalorder %s72, %s88
      %p90 = scmp.eq.s32.totalorder %s26, 0
      %p91 = por %p89, %p90
      %s92 = ssub.s32 %s27, %s39
      %s93 = ssub.s32 %s28, %s35
      %s94 = sor.u32 %s92, %s93
      %p95 = scmp.eq.s32.totalorder %s94, 0
      %s97 = sadd.s32 %s96, 1
      %s98 = scalar_select %p95, %s96, %s97
      %p101 = pneg %p95
      %p102 = scmp.eq.s32.totalorder %s20, 1
      %p103 = por %p101, %p102
      %p104 = scmp.ne.s32.totalorder %s96, %s99
      %p105 = scmp.eq.s32.totalorder %s20, 0
      %p106 = por %p104, %p105
      %p107 = scmp.ne.s32.totalorder %s96, %s99
      %p108 = scmp.eq.s32.totalorder %s25, 1
      %p109 = por %p107, %p108
      %p110 = scmp.ne.s32.totalorder %s99, %s100
      %p111 = scmp.eq.s32.totalorder %s25, 0
      %p112 = por %p110, %p111
      %p113 = scmp.ne.s32.totalorder %s99, %s100
      %p114 = scmp.eq.s32.totalorder %s26, 1
      %p115 = por %p113, %p114
      %p117 = scmp.ne.s32.totalorder %s100, %s116
      %p118 = scmp.eq.s32.totalorder %s26, 0
      %p119 = por %p117, %p118
      %s120 = ssub.s32 %s27, %s39
      %s121 = ssub.s32 %s28, %s35
      %s122 = sor.u32 %s120, %s121
      %p123 = scmp.eq.s32.totalorder %s122, 0
      %s125 = sadd.s32 %s124, 1
      %s126 = scalar_select %p123, %s124, %s125
      %p129 = pneg %p123
      %p130 = scmp.eq.s32.totalorder %s20, 1
      %p131 = por %p129, %p130
      %p132 = scmp.ne.s32.totalorder %s124, %s127
      %p133 = scmp.eq.s32.totalorder %s20, 0
      %p134 = por %p132, %p133
      %p135 = scmp.ne.s32.totalorder %s124, %s127
      %p136 = scmp.eq.s32.totalorder %s25, 1
      %p137 = por %p135, %p136
      %p138 = scmp.ne.s32.totalorder %s127, %s128
      %p139 = scmp.eq.s32.totalorder %s25, 0
      %p140 = por %p138, %p139
      %p141 = scmp.ne.s32.totalorder %s127, %s128
      %p142 = scmp.eq.s32.totalorder %s26, 1
      %p143 = por %p141, %p142
      %p145 = scmp.ne.s32.totalorder %s128, %s144
      %p146 = scmp.eq.s32.totalorder %s26, 0
      %p147 = por %p145, %p146
      %s149 = sadd.s32 %s148, 1
      %p152 = scmp.eq.s32.totalorder %s20, 1
      %p153 = scmp.ne.s32.totalorder %s148, %s150
      %p154 = scmp.eq.s32.totalorder %s20, 0
      %p155 = por %p153, %p154
      %p156 = scmp.ne.s32.totalorder %s148, %s150
      %p157 = scmp.eq.s32.totalorder %s25, 1
      %p158 = por %p156, %p157
      %p159 = scmp.ne.s32.totalorder %s150, %s151
      %p160 = scmp.eq.s32.totalorder %s25, 0
      %p161 = por %p159, %p160
      %p162 = scmp.ne.s32.totalorder %s150, %s151
      %p163 = scmp.eq.s32.totalorder %s26, 1
      %p164 = por %p162, %p163
      %p166 = scmp.ne.s32.totalorder %s151, %s165
      %p167 = scmp.eq.s32.totalorder %s26, 0
      %p168 = por %p166, %p167
      %s169 = ssub.s32 %s27, %s39
      %s170 = ssub.s32 %s28, %s35
      %s171 = sor.u32 %s169, %s170
      %p172 = scmp.eq.s32.totalorder %s171, 0
      %s174 = sadd.s32 %s173, 1
      %s175 = scalar_select %p172, %s173, %s174
      %p178 = pneg %p172
      %p179 = scmp.eq.s32.totalorder %s20, 1
      %p180 = por %p178, %p179
      %p181 = scmp.ne.s32.totalorder %s173, %s176
      %p182 = scmp.eq.s32.totalorder %s20, 0
      %p183 = por %p181, %p182
      %p184 = scmp.ne.s32.totalorder %s173, %s176
      %p185 = scmp.eq.s32.totalorder %s25, 1
      %p186 = por %p184, %p185
      %p187 = scmp.ne.s32.totalorder %s176, %s177
      %p188 = scmp.eq.s32.totalorder %s25, 0
      %p189 = por %p187, %p188
      %p190 = scmp.ne.s32.totalorder %s176, %s177
      %p191 = scmp.eq.s32.totalorder %s26, 1
      %p192 = por %p190, %p191
      %p194 = scmp.ne.s32.totalorder %s177, %s193
      %p195 = scmp.eq.s32.totalorder %s26, 0
      %p196 = por %p194, %p195
      %p197 = scmp.le.s32.totalorder 1, %s20
      %p198 = scmp.lt.s32.totalorder %s20, 3
      %p199 = pnand %p197, %p198
      %p200 = pneg %p199
      // Predicated region
      $region9: #{tpu_custom_call.1} parent=5 // pred_check
        _
      $region10: #{tpu_custom_call.1} parent=5 // pred_check_branch
        %202 = sbr.rel (%p199) target = $region12
      $region11: #{tpu_custom_call.1} parent=5 // pred_region
        %s203 = ssub.s32 %s20, 1
        // Predicated region
        $region13: #{tpu_custom_call.1} parent=11 // pred_check
          %p204 = pneg %p161
        $region14: #{tpu_custom_call.1} parent=11 // pred_check_branch
          %206 = sbr.rel (%p204) target = $region16
        $region15: #{tpu_custom_call.1} parent=11 // pred_region
          _
        $region16: #{tpu_custom_call.1} parent=11 // pred_fallthru
          _
      $region12: #{tpu_custom_call.1} parent=5 // pred_fallthru
        _
      %p207 = scmp.lt.s32.totalorder %s20, 2
      // Predicated region
      $region17: #{tpu_custom_call.1} parent=5 // pred_check
        %p208 = pneg %p207
      $region18: #{tpu_custom_call.1} parent=5 // pred_check_branch
        %210 = sbr.rel (%p208) target = $region20
      $region19: #{tpu_custom_call.1} parent=5 // pred_region
        // Predicated region
        $region21: #{tpu_custom_call.1} parent=19 // pred_check
          %p211 = pneg %p52
        $region22: #{tpu_custom_call.1} parent=19 // pred_check_branch
          %213 = sbr.rel (%p211) target = $region24
        $region23: #{tpu_custom_call.1} parent=19 // pred_region
          %s214 = sand.u32 %s42, 1
          %s215 = scalar_lea.sflag [#allocation3], %s214
          %s216 = sand.u32 %s42, 1
          %s217 = smul.addr %s216, 8
          %s218 = scalar_lea.vmem [#allocation2], %s217
          %s220 = ssub.s32 128, 128
          %221 = vsyncadd %s215, %s220
          %s222 = smul.addr %s27, 128
          %s223 = scalar_lea.hbm %s0, %s222
          %s225 = sshll.u32 %s218, 4
          %s226 = int_to_ptr.vmem [resolvable:$true] %s225
          %228 = dma.hbm_to_vmem [thread:$0]  %s223, 128, %s226, %s215
        $region24: #{tpu_custom_call.1} parent=19 // pred_fallthru
          _
        // Predicated region
        $region25: #{tpu_custom_call.1} parent=19 // pred_check
          %p229 = pneg %p78
        $region26: #{tpu_custom_call.1} parent=19 // pred_check_branch
          %231 = sbr.rel (%p229) target = $region28
        $region27: #{tpu_custom_call.1} parent=19 // pred_region
          %s232 = sand.u32 %s20, 1
          %s233 = scalar_lea.sflag [#allocation6], %s232
          %s234 = sand.u32 %s68, 1
          %s235 = smul.addr %s234, 8
          %s236 = scalar_lea.vmem [#allocation5], %s235
          %s238 = ssub.s32 128, 128
          %239 = vsyncadd %s233, %s238
          %s240 = smul.addr %s27, 128
          %s241 = scalar_lea.hbm %s1, %s240
          %s243 = sshll.u32 %s236, 4
          %s244 = int_to_ptr.vmem [resolvable:$true] %s243
          %246 = dma.hbm_to_vmem [thread:$0]  %s241, 128, %s244, %s233
        $region28: #{tpu_custom_call.1} parent=19 // pred_fallthru
          _
        // Predicated region
        $region29: #{tpu_custom_call.1} parent=19 // pred_check
          %p247 = pneg %p106
        $region30: #{tpu_custom_call.1} parent=19 // pred_check_branch
          %249 = sbr.rel (%p247) target = $region32
        $region31: #{tpu_custom_call.1} parent=19 // pred_region
          %p250 = scmp.lt.s32.totalorder %s27, 1
          %s251 = scalar_select %p250, %s27, 1
          %p252 = scmp.lt.s32.totalorder %s28, 0
          %s253 = scalar_select %p252, %s28, 0
          %s254 = sadd.s32 %s253, %s251
          %s255 = smul.addr %s254, 8
          %s256 = scalar_lea.vmem %s2, %s255
        $region32: #{tpu_custom_call.1} parent=19 // pred_fallthru
          _
        // Predicated region
        $region33: #{tpu_custom_call.1} parent=19 // pred_check
          %p257 = pneg %p134
        $region34: #{tpu_custom_call.1} parent=19 // pred_check_branch
          %259 = sbr.rel (%p257) target = $region36
        $region35: #{tpu_custom_call.1} parent=19 // pred_region
          %s260 = sand.u32 %s20, 1
          %s261 = scalar_lea.sflag [#allocation6], %s260
          %s262 = sand.u32 %s124, 1
          %s263 = smul.addr %s262, 8
          %s264 = scalar_lea.vmem [#allocation7], %s263
          %s266 = ssub.s32 128, 128
          %267 = vsyncadd %s261, %s266
          %s268 = sadd.s32 %s28, %s27
          %s269 = smul.addr %s268, 128
          %s270 = scalar_lea.hbm %s3, %s269
          %s272 = sshll.u32 %s264, 4
          %s273 = int_to_ptr.vmem [resolvable:$true] %s272
          %275 = dma.hbm_to_vmem [thread:$0]  %s270, 128, %s273, %s261
        $region36: #{tpu_custom_call.1} parent=19 // pred_fallthru
          _
      $region20: #{tpu_custom_call.1} parent=5 // pred_fallthru
        _
      %p276 = scmp.le.s32.totalorder 1, %s20
      %p277 = scmp.lt.s32.totalorder %s20, 3
      %p278 = pnand %p276, %p277
      %p279 = pneg %p278
      // Predicated region
      $region37: #{tpu_custom_call.1} parent=5 // pred_check
        _
      $region38: #{tpu_custom_call.1} parent=5 // pred_check_branch
        %281 = sbr.rel (%p278) target = $region40
      $region39: #{tpu_custom_call.1} parent=5 // pred_region
        %s282 = ssub.s32 %s20, 1
        %s283 = sand.u32 %s45, 1
        %s284 = scalar_lea.sflag [#allocation3], %s283
        %s285 = sand.u32 %s45, 1
        %s286 = smul.addr %s285, 8
        %s287 = scalar_lea.vmem [#allocation2], %s286
        // Predicated region
        $region41: #{tpu_custom_call.1} parent=39 // pred_check
          %p288 = pneg %p58
        $region42: #{tpu_custom_call.1} parent=39 // pred_check_branch
          %290 = sbr.rel (%p288) target = $region44
        $region43: #{tpu_custom_call.1} parent=39 // pred_region
          %291 = dma.done %s284, 128
        $region44: #{tpu_custom_call.1} parent=39 // pred_fallthru
          _
        %s292 = sand.u32 %s25, 1
        %s293 = scalar_lea.sflag [#allocation6], %s292
        %s294 = sand.u32 %s71, 1
        %s295 = smul.addr %s294, 8
        %s296 = scalar_lea.vmem [#allocation5], %s295
        // Predicated region
        $region45: #{tpu_custom_call.1} parent=39 // pred_check
          %p297 = pneg %p84
        $region46: #{tpu_custom_call.1} parent=39 // pred_check_branch
          %299 = sbr.rel (%p297) target = $region48
        $region47: #{tpu_custom_call.1} parent=39 // pred_region
          %300 = dma.done %s293, 128
        $region48: #{tpu_custom_call.1} parent=39 // pred_fallthru
          _
        %s301 = sand.u32 %s25, 1
        %s302 = scalar_lea.sflag [#allocation6], %s301
        %s303 = sand.u32 %s127, 1
        %s304 = smul.addr %s303, 8
        %s305 = scalar_lea.vmem [#allocation7], %s304
        // Predicated region
        $region49: #{tpu_custom_call.1} parent=39 // pred_check
          %p306 = pneg %p140
        $region50: #{tpu_custom_call.1} parent=39 // pred_check_branch
          %308 = sbr.rel (%p306) target = $region52
        $region51: #{tpu_custom_call.1} parent=39 // pred_region
          %309 = dma.done %s302, 128
        $region52: #{tpu_custom_call.1} parent=39 // pred_fallthru
          _
        %s310 = sand.u32 %s45, 1
        %s311 = scalar_lea.sflag [#allocation3], %s310
        %s312 = sand.u32 %s45, 1
        %s313 = smul.addr %s312, 8
        %s314 = scalar_lea.vmem [#allocation2], %s313
        %p315 = pneg %p58
        %p316 = pneg %p55
        %s317 = sand.u32 %s25, 1
        %s318 = scalar_lea.sflag [#allocation6], %s317
        %s319 = sand.u32 %s71, 1
        %s320 = smul.addr %s319, 8
        %s321 = scalar_lea.vmem [#allocation5], %s320
        %p322 = pneg %p84
        %p323 = pneg %p81
        %p324 = scmp.lt.s32.totalorder %s29, 1
        %s325 = scalar_select %p324, %s29, 1
        %p326 = scmp.lt.s32.totalorder %s30, 0
        %s327 = scalar_select %p326, %s30, 0
        %s328 = sadd.s32 %s327, %s325
        %s329 = smul.addr %s328, 8
        %s330 = scalar_lea.vmem %s2, %s329
        %p331 = pneg %p112
        %p332 = pneg %p109
        %s333 = sand.u32 %s25, 1
        %s334 = scalar_lea.sflag [#allocation6], %s333
        %s335 = sand.u32 %s127, 1
        %s336 = smul.addr %s335, 8
        %s337 = scalar_lea.vmem [#allocation7], %s336
        %p338 = pneg %p140
        %p339 = pneg %p137
        %p340 = pneg %p161
        %p341 = pneg %p158
        %p342 = pneg %p189
        %p343 = pneg %p186
        %s344 = sand.u32 %s176, 1
        %s345 = scalar_lea.sflag [#allocation4], %s344
        %s346 = sand.u32 %s176, 1
        %s347 = smul.addr %s346, 8
        %s348 = scalar_lea.vmem [#allocation8], %s347
        %p349 = scmp.lt.s32.totalorder %s29, 1
        %s350 = scalar_select %p349, %s29, 1
        %p351 = scmp.lt.s32.totalorder %s30, 0
        %s352 = scalar_select %p351, %s30, 0
        %s353 = sadd.s32 %s352, %s350
        %s354 = smul.addr %s353, 8
        %s355 = scalar_lea.vmem %s2, %s354
        %v356 = vld [vmem:[%s287] sm:$0xff]
        %v357 = vld [vmem:[%s296] sm:$0xff]
        %v358 = vld [vmem:[%s355] sm:$0xff]
        %v359 = vld [vmem:[%s305] sm:$0xff]
        %v360 = vlaneseq
        %v361 = vshrl.u32 %v360, 7
        %v362 = vadd.s32 %v361, 8
        %v363 = vadd.s32 %v361, 16
        %v364 = vadd.s32 %v361, 24
        %v365 = vadd.s32 %v361, 32
        %v366 = vadd.s32 %v361, 40
        %v367 = vadd.s32 %v361, 48
        %v368 = vadd.s32 %v361, 56
        %v369 = vadd.s32 %v361, 64
        %v370 = vadd.s32 %v361, 72
        %v371 = vadd.s32 %v361, 80
        %v372 = vadd.s32 %v361, 88
        %v373 = vadd.s32 %v361, 96
        %v374 = vadd.s32 %v361, 104
        %v375 = vadd.s32 %v361, 112
        %v376 = vadd.s32 %v361, 120
        %v377 = vlaneseq
        %v378 = vshrl.u32 %v377, 7
        %v379 = vsub.s32 0, %v378
        %v380 = vrot.slane %v358, %v379
        %vm381 = vcmp.eq.s32.totalorder %v361, %v380
        %vm382 = vcmp.eq.s32.totalorder %v362, %v380
        %vm383 = vcmp.eq.s32.totalorder %v363, %v380
        %vm384 = vcmp.eq.s32.totalorder %v364, %v380
        %vm385 = vcmp.eq.s32.totalorder %v365, %v380
        %vm386 = vcmp.eq.s32.totalorder %v366, %v380
        %vm387 = vcmp.eq.s32.totalorder %v367, %v380
        %vm388 = vcmp.eq.s32.totalorder %v368, %v380
        %vm389 = vcmp.eq.s32.totalorder %v369, %v380
        %vm390 = vcmp.eq.s32.totalorder %v370, %v380
        %vm391 = vcmp.eq.s32.totalorder %v371, %v380
        %vm392 = vcmp.eq.s32.totalorder %v372, %v380
        %vm393 = vcmp.eq.s32.totalorder %v373, %v380
        %vm394 = vcmp.eq.s32.totalorder %v374, %v380
        %vm395 = vcmp.eq.s32.totalorder %v375, %v380
        %vm396 = vcmp.eq.s32.totalorder %v376, %v380
        %v397 = vsel %vm381, 1.0, 0.0
        %v398 = vsel %vm382, 1.0, 0.0
        %v399 = vsel %vm383, 1.0, 0.0
        %v400 = vsel %vm384, 1.0, 0.0
        %v401 = vsel %vm385, 1.0, 0.0
        %v402 = vsel %vm386, 1.0, 0.0
        %v403 = vsel %vm387, 1.0, 0.0
        %v404 = vsel %vm388, 1.0, 0.0
        %v405 = vsel %vm389, 1.0, 0.0
        %v406 = vsel %vm390, 1.0, 0.0
        %v407 = vsel %vm391, 1.0, 0.0
        %v408 = vsel %vm392, 1.0, 0.0
        %v409 = vsel %vm393, 1.0, 0.0
        %v410 = vsel %vm394, 1.0, 0.0
        %v411 = vsel %vm395, 1.0, 0.0
        %v412 = vsel %vm396, 1.0, 0.0
        %v413 = vlaneseq
        %v414 = vshrl.u32 %v413, 7
        %v415 = vsub.s32 0, %v414
        %v416 = vrot.slane %v359, %v415
        %vm417 = vcmp.eq.s32.totalorder %v361, %v416
        %vm418 = vcmp.eq.s32.totalorder %v362, %v416
        %vm419 = vcmp.eq.s32.totalorder %v363, %v416
        %vm420 = vcmp.eq.s32.totalorder %v364, %v416
        %vm421 = vcmp.eq.s32.totalorder %v365, %v416
        %vm422 = vcmp.eq.s32.totalorder %v366, %v416
        %vm423 = vcmp.eq.s32.totalorder %v367, %v416
        %vm424 = vcmp.eq.s32.totalorder %v368, %v416
        %vm425 = vcmp.eq.s32.totalorder %v369, %v416
        %vm426 = vcmp.eq.s32.totalorder %v370, %v416
        %vm427 = vcmp.eq.s32.totalorder %v371, %v416
        %vm428 = vcmp.eq.s32.totalorder %v372, %v416
        %vm429 = vcmp.eq.s32.totalorder %v373, %v416
        %vm430 = vcmp.eq.s32.totalorder %v374, %v416
        %vm431 = vcmp.eq.s32.totalorder %v375, %v416
        %vm432 = vcmp.eq.s32.totalorder %v376, %v416
        %v433 = vsel %vm417, 1.0, 0.0
        %v434 = vsel %vm418, 1.0, 0.0
        %v435 = vsel %vm419, 1.0, 0.0
        %v436 = vsel %vm420, 1.0, 0.0
        %v437 = vsel %vm421, 1.0, 0.0
        %v438 = vsel %vm422, 1.0, 0.0
        %v439 = vsel %vm423, 1.0, 0.0
        %v440 = vsel %vm424, 1.0, 0.0
        %v441 = vsel %vm425, 1.0, 0.0
        %v442 = vsel %vm426, 1.0, 0.0
        %v443 = vsel %vm427, 1.0, 0.0
        %v444 = vsel %vm428, 1.0, 0.0
        %v445 = vsel %vm429, 1.0, 0.0
        %v446 = vsel %vm430, 1.0, 0.0
        %v447 = vsel %vm431, 1.0, 0.0
        %v448 = vsel %vm432, 1.0, 0.0
        %449 = vmatprep.subr.mxu0 0.0
        %450 = vmatpush1.msra.mxu0 %v433
        %451 = vmatprep.subr.mxu0 0.0
        %452 = vmatpush1.msra.mxu0 %v434
        %453 = vmatprep.subr.mxu0 0.0
        %454 = vmatpush1.msra.mxu0 %v435
        %455 = vmatprep.subr.mxu0 0.0
        %456 = vmatpush1.msra.mxu0 %v436
        %457 = vmatprep.subr.mxu0 0.0
        %458 = vmatpush1.msra.mxu0 %v437
        %459 = vmatprep.subr.mxu0 0.0
        %460 = vmatpush1.msra.mxu0 %v438
        %461 = vmatprep.subr.mxu0 0.0
        %462 = vmatpush1.msra.mxu0 %v439
        %463 = vmatprep.subr.mxu0 0.0
        %464 = vmatpush1.msra.mxu0 %v440
        %465 = vmatprep.subr.mxu0 0.0
        %466 = vmatpush1.msra.mxu0 %v441
        %467 = vmatprep.subr.mxu0 0.0
        %468 = vmatpush1.msra.mxu0 %v442
        %469 = vmatprep.subr.mxu0 0.0
        %470 = vmatpush1.msra.mxu0 %v443
        %471 = vmatprep.subr.mxu0 0.0
        %472 = vmatpush1.msra.mxu0 %v444
        %473 = vmatprep.subr.mxu0 0.0
        %474 = vmatpush1.msra.mxu0 %v445
        %475 = vmatprep.subr.mxu0 0.0
        %476 = vmatpush1.msra.mxu0 %v446
        %477 = vmatprep.subr.mxu0 0.0
        %478 = vmatpush1.msra.mxu0 %v447
        %479 = vmatprep.subr.mxu0 0.0
        %480 = vmatpush1.msra.mxu0 %v448
        %481 = vmatprep.subr.mxu0 0.0
        %482 = vmatpush1.msra.mxu0 0.0
        %483 = vmatprep.subr.mxu0 0.0
        %484 = vmatpush1.msra.mxu0 0.0
        %485 = vmatprep.subr.mxu0 0.0
        %486 = vmatpush1.msra.mxu0 0.0
        %487 = vmatprep.subr.mxu0 0.0
        %488 = vmatpush1.msra.mxu0 0.0
        %489 = vmatprep.subr.mxu0 0.0
        %490 = vmatpush1.msra.mxu0 0.0
        %491 = vmatprep.subr.mxu0 0.0
        %492 = vmatpush1.msra.mxu0 0.0
        %493 = vmatprep.subr.mxu0 0.0
        %494 = vmatpush1.msra.mxu0 0.0
        %495 = vmatprep.subr.mxu0 0.0
        %496 = vmatpush1.msra.mxu0 0.0
        %497 = vmatprep.subr.mxu0 0.0
        %498 = vmatpush1.msra.mxu0 0.0
        %499 = vmatprep.subr.mxu0 0.0
        %500 = vmatpush1.msra.mxu0 0.0
        %501 = vmatprep.subr.mxu0 0.0
        %502 = vmatpush1.msra.mxu0 0.0
        %503 = vmatprep.subr.mxu0 0.0
        %504 = vmatpush1.msra.mxu0 0.0
        %505 = vmatprep.subr.mxu0 0.0
        %506 = vmatpush1.msra.mxu0 0.0
        %507 = vmatprep.subr.mxu0 0.0
        %508 = vmatpush1.msra.mxu0 0.0
        %509 = vmatprep.subr.mxu0 0.0
        %510 = vmatpush1.msra.mxu0 0.0
        %511 = vmatprep.subr.mxu0 0.0
        %512 = vmatpush1.msra.mxu0 0.0
        %513 = vmatprep.mubr.f32.mxu0 0.0
        %514 = vmatmul.mubr.f32.gmra.mrb[0].mxu0 %v357
        %v515 = vpop.f32.mrb[0].mxu0
        %v516 = vadd.f32 0.0, %v515
        %v517 = vpop.f32.mrb[0].mxu0
        %518 = vdwg.mxu0
        %519 = vmatprep.subr.mxu0 0.0
        %520 = vmatpush1.msra.mxu0 %v397
        %521 = vmatprep.subr.mxu0 0.0
        %522 = vmatpush1.msra.mxu0 %v398
        %523 = vmatprep.subr.mxu0 0.0
        %524 = vmatpush1.msra.mxu0 %v399
        %525 = vmatprep.subr.mxu0 0.0
        %526 = vmatpush1.msra.mxu0 %v400
        %527 = vmatprep.subr.mxu0 0.0
        %528 = vmatpush1.msra.mxu0 %v401
        %529 = vmatprep.subr.mxu0 0.0
        %530 = vmatpush1.msra.mxu0 %v402
        %531 = vmatprep.subr.mxu0 0.0
        %532 = vmatpush1.msra.mxu0 %v403
        %533 = vmatprep.subr.mxu0 0.0
        %534 = vmatpush1.msra.mxu0 %v404
        %535 = vmatprep.subr.mxu0 0.0
        %536 = vmatpush1.msra.mxu0 %v405
        %537 = vmatprep.subr.mxu0 0.0
        %538 = vmatpush1.msra.mxu0 %v406
        %539 = vmatprep.subr.mxu0 0.0
        %540 = vmatpush1.msra.mxu0 %v407
        %541 = vmatprep.subr.mxu0 0.0
        %542 = vmatpush1.msra.mxu0 %v408
        %543 = vmatprep.subr.mxu0 0.0
        %544 = vmatpush1.msra.mxu0 %v409
        %545 = vmatprep.subr.mxu0 0.0
        %546 = vmatpush1.msra.mxu0 %v410
        %547 = vmatprep.subr.mxu0 0.0
        %548 = vmatpush1.msra.mxu0 %v411
        %549 = vmatprep.subr.mxu0 0.0
        %550 = vmatpush1.msra.mxu0 %v412
        %551 = vmatprep.subr.mxu0 0.0
        %552 = vmatpush1.msra.mxu0 0.0
        %553 = vmatprep.subr.mxu0 0.0
        %554 = vmatpush1.msra.mxu0 0.0
        %555 = vmatprep.subr.mxu0 0.0
        %556 = vmatpush1.msra.mxu0 0.0
        %557 = vmatprep.subr.mxu0 0.0
        %558 = vmatpush1.msra.mxu0 0.0
        %559 = vmatprep.subr.mxu0 0.0
        %560 = vmatpush1.msra.mxu0 0.0
        %561 = vmatprep.subr.mxu0 0.0
        %562 = vmatpush1.msra.mxu0 0.0
        %563 = vmatprep.subr.mxu0 0.0
        %564 = vmatpush1.msra.mxu0 0.0
        %565 = vmatprep.subr.mxu0 0.0
        %566 = vmatpush1.msra.mxu0 0.0
        %567 = vmatprep.subr.mxu0 0.0
        %568 = vmatpush1.msra.mxu0 0.0
        %569 = vmatprep.subr.mxu0 0.0
        %570 = vmatpush1.msra.mxu0 0.0
        %571 = vmatprep.subr.mxu0 0.0
        %572 = vmatpush1.msra.mxu0 0.0
        %573 = vmatprep.subr.mxu0 0.0
        %574 = vmatpush1.msra.mxu0 0.0
        %575 = vmatprep.subr.mxu0 0.0
        %576 = vmatpush1.msra.mxu0 0.0
        %577 = vmatprep.subr.mxu0 0.0
        %578 = vmatpush1.msra.mxu0 0.0
        %579 = vmatprep.subr.mxu0 0.0
        %580 = vmatpush1.msra.mxu0 0.0
        %581 = vmatprep.subr.mxu0 0.0
        %582 = vmatpush1.msra.mxu0 0.0
        %583 = vmatprep.mubr.f32.mxu0 0.0
        %584 = vmatmul.mubr.f32.gmra.mrb[0].mxu0 %v356
        %v585 = vpop.f32.mrb[0].mxu0
        %v586 = vadd.f32 %v516, %v585
        %v587 = vpop.f32.mrb[0].mxu0
        %588 = vdwg.mxu0
        %v589 = vlaneseq
        %v590 = vshrl.u32 %v589, 7
        %v591 = vsub.s32 1, %v590
        %v592 = vrot.slane %v358, %v591
        %vm593 = vcmp.eq.s32.totalorder %v361, %v592
        %vm594 = vcmp.eq.s32.totalorder %v362, %v592
        %vm595 = vcmp.eq.s32.totalorder %v363, %v592
        %vm596 = vcmp.eq.s32.totalorder %v364, %v592
        %vm597 = vcmp.eq.s32.totalorder %v365, %v592
        %vm598 = vcmp.eq.s32.totalorder %v366, %v592
        %vm599 = vcmp.eq.s32.totalorder %v367, %v592
        %vm600 = vcmp.eq.s32.totalorder %v368, %v592
        %vm601 = vcmp.eq.s32.totalorder %v369, %v592
        %vm602 = vcmp.eq.s32.totalorder %v370, %v592
        %vm603 = vcmp.eq.s32.totalorder %v371, %v592
        %vm604 = vcmp.eq.s32.totalorder %v372, %v592
        %vm605 = vcmp.eq.s32.totalorder %v373, %v592
        %vm606 = vcmp.eq.s32.totalorder %v374, %v592
        %vm607 = vcmp.eq.s32.totalorder %v375, %v592
        %vm608 = vcmp.eq.s32.totalorder %v376, %v592
        %v609 = vsel %vm593, 1.0, 0.0
        %v610 = vsel %vm594, 1.0, 0.0
        %v611 = vsel %vm595, 1.0, 0.0
        %v612 = vsel %vm596, 1.0, 0.0
        %v613 = vsel %vm597, 1.0, 0.0
        %v614 = vsel %vm598, 1.0, 0.0
        %v615 = vsel %vm599, 1.0, 0.0
        %v616 = vsel %vm600, 1.0, 0.0
        %v617 = vsel %vm601, 1.0, 0.0
        %v618 = vsel %vm602, 1.0, 0.0
        %v619 = vsel %vm603, 1.0, 0.0
        %v620 = vsel %vm604, 1.0, 0.0
        %v621 = vsel %vm605, 1.0, 0.0
        %v622 = vsel %vm606, 1.0, 0.0
        %v623 = vsel %vm607, 1.0, 0.0
        %v624 = vsel %vm608, 1.0, 0.0
        %v625 = vlaneseq
        %v626 = vshrl.u32 %v625, 7
        %v627 = vsub.s32 1, %v626
        %v628 = vrot.slane %v359, %v627
        %vm629 = vcmp.eq.s32.totalorder %v361, %v628
        %vm630 = vcmp.eq.s32.totalorder %v362, %v628
        %vm631 = vcmp.eq.s32.totalorder %v363, %v628
        %vm632 = vcmp.eq.s32.totalorder %v364, %v628
        %vm633 = vcmp.eq.s32.totalorder %v365, %v628
        %vm634 = vcmp.eq.s32.totalorder %v366, %v628
        %vm635 = vcmp.eq.s32.totalorder %v367, %v628
        %vm636 = vcmp.eq.s32.totalorder %v368, %v628
        %vm637 = vcmp.eq.s32.totalorder %v369, %v628
        %vm638 = vcmp.eq.s32.totalorder %v370, %v628
        %vm639 = vcmp.eq.s32.totalorder %v371, %v628
        %vm640 = vcmp.eq.s32.totalorder %v372, %v628
        %vm641 = vcmp.eq.s32.totalorder %v373, %v628
        %vm642 = vcmp.eq.s32.totalorder %v374, %v628
        %vm643 = vcmp.eq.s32.totalorder %v375, %v628
        %vm644 = vcmp.eq.s32.totalorder %v376, %v628
        %v645 = vsel %vm629, 1.0, 0.0
        %v646 = vsel %vm630, 1.0, 0.0
        %v647 = vsel %vm631, 1.0, 0.0
        %v648 = vsel %vm632, 1.0, 0.0
        %v649 = vsel %vm633, 1.0, 0.0
        %v650 = vsel %vm634, 1.0, 0.0
        %v651 = vsel %vm635, 1.0, 0.0
        %v652 = vsel %vm636, 1.0, 0.0
        %v653 = vsel %vm637, 1.0, 0.0
        %v654 = vsel %vm638, 1.0, 0.0
        %v655 = vsel %vm639, 1.0, 0.0
        %v656 = vsel %vm640, 1.0, 0.0
        %v657 = vsel %vm641, 1.0, 0.0
        %v658 = vsel %vm642, 1.0, 0.0
        %v659 = vsel %vm643, 1.0, 0.0
        %v660 = vsel %vm644, 1.0, 0.0
        %661 = vmatprep.subr.mxu0 0.0
        %662 = vmatpush1.msra.mxu0 %v645
        %663 = vmatprep.subr.mxu0 0.0
        %664 = vmatpush1.msra.mxu0 %v646
        %665 = vmatprep.subr.mxu0 0.0
        %666 = vmatpush1.msra.mxu0 %v647
        %667 = vmatprep.subr.mxu0 0.0
        %668 = vmatpush1.msra.mxu0 %v648
        %669 = vmatprep.subr.mxu0 0.0
        %670 = vmatpush1.msra.mxu0 %v649
        %671 = vmatprep.subr.mxu0 0.0
        %672 = vmatpush1.msra.mxu0 %v650
        %673 = vmatprep.subr.mxu0 0.0
        %674 = vmatpush1.msra.mxu0 %v651
        %675 = vmatprep.subr.mxu0 0.0
        %676 = vmatpush1.msra.mxu0 %v652
        %677 = vmatprep.subr.mxu0 0.0
        %678 = vmatpush1.msra.mxu0 %v653
        %679 = vmatprep.subr.mxu0 0.0
        %680 = vmatpush1.msra.mxu0 %v654
        %681 = vmatprep.subr.mxu0 0.0
        %682 = vmatpush1.msra.mxu0 %v655
        %683 = vmatprep.subr.mxu0 0.0
        %684 = vmatpush1.msra.mxu0 %v656
        %685 = vmatprep.subr.mxu0 0.0
        %686 = vmatpush1.msra.mxu0 %v657
        %687 = vmatprep.subr.mxu0 0.0
        %688 = vmatpush1.msra.mxu0 %v658
        %689 = vmatprep.subr.mxu0 0.0
        %690 = vmatpush1.msra.mxu0 %v659
        %691 = vmatprep.subr.mxu0 0.0
        %692 = vmatpush1.msra.mxu0 %v660
        %693 = vmatprep.subr.mxu0 0.0
        %694 = vmatpush1.msra.mxu0 0.0
        %695 = vmatprep.subr.mxu0 0.0
        %696 = vmatpush1.msra.mxu0 0.0
        %697 = vmatprep.subr.mxu0 0.0
        %698 = vmatpush1.msra.mxu0 0.0
        %699 = vmatprep.subr.mxu0 0.0
        %700 = vmatpush1.msra.mxu0 0.0
        %701 = vmatprep.subr.mxu0 0.0
        %702 = vmatpush1.msra.mxu0 0.0
        %703 = vmatprep.subr.mxu0 0.0
        %704 = vmatpush1.msra.mxu0 0.0
        %705 = vmatprep.subr.mxu0 0.0
        %706 = vmatpush1.msra.mxu0 0.0
        %707 = vmatprep.subr.mxu0 0.0
        %708 = vmatpush1.msra.mxu0 0.0
        %709 = vmatprep.subr.mxu0 0.0
        %710 = vmatpush1.msra.mxu0 0.0
        %711 = vmatprep.subr.mxu0 0.0
        %712 = vmatpush1.msra.mxu0 0.0
        %713 = vmatprep.subr.mxu0 0.0
        %714 = vmatpush1.msra.mxu0 0.0
        %715 = vmatprep.subr.mxu0 0.0
        %716 = vmatpush1.msra.mxu0 0.0
        %717 = vmatprep.subr.mxu0 0.0
        %718 = vmatpush1.msra.mxu0 0.0
        %719 = vmatprep.subr.mxu0 0.0
        %720 = vmatpush1.msra.mxu0 0.0
        %721 = vmatprep.subr.mxu0 0.0
        %722 = vmatpush1.msra.mxu0 0.0
        %723 = vmatprep.subr.mxu0 0.0
        %724 = vmatpush1.msra.mxu0 0.0
        %725 = vmatprep.mubr.f32.mxu0 0.0
        %726 = vmatmul.mubr.f32.gmra.mrb[0].mxu0 %v357
        %v727 = vpop.f32.mrb[0].mxu0
        %v728 = vadd.f32 0.0, %v727
        %v729 = vpop.f32.mrb[0].mxu0
        %730 = vdwg.mxu0
        %731 = vmatprep.subr.mxu0 0.0
        %732 = vmatpush1.msra.mxu0 %v609
        %733 = vmatprep.subr.mxu0 0.0
        %734 = vmatpush1.msra.mxu0 %v610
        %735 = vmatprep.subr.mxu0 0.0
        %736 = vmatpush1.msra.mxu0 %v611
        %737 = vmatprep.subr.mxu0 0.0
        %738 = vmatpush1.msra.mxu0 %v612
        %739 = vmatprep.subr.mxu0 0.0
        %740 = vmatpush1.msra.mxu0 %v613
        %741 = vmatprep.subr.mxu0 0.0
        %742 = vmatpush1.msra.mxu0 %v614
        %743 = vmatprep.subr.mxu0 0.0
        %744 = vmatpush1.msra.mxu0 %v615
        %745 = vmatprep.subr.mxu0 0.0
        %746 = vmatpush1.msra.mxu0 %v616
        %747 = vmatprep.subr.mxu0 0.0
        %748 = vmatpush1.msra.mxu0 %v617
        %749 = vmatprep.subr.mxu0 0.0
        %750 = vmatpush1.msra.mxu0 %v618
        %751 = vmatprep.subr.mxu0 0.0
        %752 = vmatpush1.msra.mxu0 %v619
        %753 = vmatprep.subr.mxu0 0.0
        %754 = vmatpush1.msra.mxu0 %v620
        %755 = vmatprep.subr.mxu0 0.0
        %756 = vmatpush1.msra.mxu0 %v621
        %757 = vmatprep.subr.mxu0 0.0
        %758 = vmatpush1.msra.mxu0 %v622
        %759 = vmatprep.subr.mxu0 0.0
        %760 = vmatpush1.msra.mxu0 %v623
        %761 = vmatprep.subr.mxu0 0.0
        %762 = vmatpush1.msra.mxu0 %v624
        %763 = vmatprep.subr.mxu0 0.0
        %764 = vmatpush1.msra.mxu0 0.0
        %765 = vmatprep.subr.mxu0 0.0
        %766 = vmatpush1.msra.mxu0 0.0
        %767 = vmatprep.subr.mxu0 0.0
        %768 = vmatpush1.msra.mxu0 0.0
        %769 = vmatprep.subr.mxu0 0.0
        %770 = vmatpush1.msra.mxu0 0.0
        %771 = vmatprep.subr.mxu0 0.0
        %772 = vmatpush1.msra.mxu0 0.0
        %773 = vmatprep.subr.mxu0 0.0
        %774 = vmatpush1.msra.mxu0 0.0
        %775 = vmatprep.subr.mxu0 0.0
        %776 = vmatpush1.msra.mxu0 0.0
        %777 = vmatprep.subr.mxu0 0.0
        %778 = vmatpush1.msra.mxu0 0.0
        %779 = vmatprep.subr.mxu0 0.0
        %780 = vmatpush1.msra.mxu0 0.0
        %781 = vmatprep.subr.mxu0 0.0
        %782 = vmatpush1.msra.mxu0 0.0
        %783 = vmatprep.subr.mxu0 0.0
        %784 = vmatpush1.msra.mxu0 0.0
        %785 = vmatprep.subr.mxu0 0.0
        %786 = vmatpush1.msra.mxu0 0.0
        %787 = vmatprep.subr.mxu0 0.0
        %788 = vmatpush1.msra.mxu0 0.0
        %789 = vmatprep.subr.mxu0 0.0
        %790 = vmatpush1.msra.mxu0 0.0
        %791 = vmatprep.subr.mxu0 0.0
        %792 = vmatpush1.msra.mxu0 0.0
        %793 = vmatprep.subr.mxu0 0.0
        %794 = vmatpush1.msra.mxu0 0.0
        %795 = vmatprep.mubr.f32.mxu0 0.0
        %796 = vmatmul.mubr.f32.gmra.mrb[0].mxu0 %v356
        %v797 = vpop.f32.mrb[0].mxu0
        %v798 = vadd.f32 %v728, %v797
        %v799 = vpop.f32.mrb[0].mxu0
        %800 = vdwg.mxu0
        %v801 = vmax.f32 %v586, %v798
        %v802 = vlaneseq
        %v803 = vshrl.u32 %v802, 7
        %v804 = vsub.s32 2, %v803
        %v805 = vrot.slane %v358, %v804
        %vm806 = vcmp.eq.s32.totalorder %v361, %v805
        %vm807 = vcmp.eq.s32.totalorder %v362, %v805
        %vm808 = vcmp.eq.s32.totalorder %v363, %v805
        %vm809 = vcmp.eq.s32.totalorder %v364, %v805
        %vm810 = vcmp.eq.s32.totalorder %v365, %v805
        %vm811 = vcmp.eq.s32.totalorder %v366, %v805
        %vm812 = vcmp.eq.s32.totalorder %v367, %v805
        %vm813 = vcmp.eq.s32.totalorder %v368, %v805
        %vm814 = vcmp.eq.s32.totalorder %v369, %v805
        %vm815 = vcmp.eq.s32.totalorder %v370, %v805
        %vm816 = vcmp.eq.s32.totalorder %v371, %v805
        %vm817 = vcmp.eq.s32.totalorder %v372, %v805
        %vm818 = vcmp.eq.s32.totalorder %v373, %v805
        %vm819 = vcmp.eq.s32.totalorder %v374, %v805
        %vm820 = vcmp.eq.s32.totalorder %v375, %v805
        %vm821 = vcmp.eq.s32.totalorder %v376, %v805
        %v822 = vsel %vm806, 1.0, 0.0
        %v823 = vsel %vm807, 1.0, 0.0
        %v824 = vsel %vm808, 1.0, 0.0
        %v825 = vsel %vm809, 1.0, 0.0
        %v826 = vsel %vm810, 1.0, 0.0
        %v827 = vsel %vm811, 1.0, 0.0
        %v828 = vsel %vm812, 1.0, 0.0
        %v829 = vsel %vm813, 1.0, 0.0
        %v830 = vsel %vm814, 1.0, 0.0
        %v831 = vsel %vm815, 1.0, 0.0
        %v832 = vsel %vm816, 1.0, 0.0
        %v833 = vsel %vm817, 1.0, 0.0
        %v834 = vsel %vm818, 1.0, 0.0
        %v835 = vsel %vm819, 1.0, 0.0
        %v836 = vsel %vm820, 1.0, 0.0
        %v837 = vsel %vm821, 1.0, 0.0
        %v838 = vlaneseq
        %v839 = vshrl.u32 %v838, 7
        %v840 = vsub.s32 2, %v839
        %v841 = vrot.slane %v359, %v840
        %vm842 = vcmp.eq.s32.totalorder %v361, %v841
        %vm843 = vcmp.eq.s32.totalorder %v362, %v841
        %vm844 = vcmp.eq.s32.totalorder %v363, %v841
        %vm845 = vcmp.eq.s32.totalorder %v364, %v841
        %vm846 = vcmp.eq.s32.totalorder %v365, %v841
        %vm847 = vcmp.eq.s32.totalorder %v366, %v841
        %vm848 = vcmp.eq.s32.totalorder %v367, %v841
        %vm849 = vcmp.eq.s32.totalorder %v368, %v841
        %vm850 = vcmp.eq.s32.totalorder %v369, %v841
        %vm851 = vcmp.eq.s32.totalorder %v370, %v841
        %vm852 = vcmp.eq.s32.totalorder %v371, %v841
        %vm853 = vcmp.eq.s32.totalorder %v372, %v841
        %vm854 = vcmp.eq.s32.totalorder %v373, %v841
        %vm855 = vcmp.eq.s32.totalorder %v374, %v841
        %vm856 = vcmp.eq.s32.totalorder %v375, %v841
        %vm857 = vcmp.eq.s32.totalorder %v376, %v841
        %v858 = vsel %vm842, 1.0, 0.0
        %v859 = vsel %vm843, 1.0, 0.0
        %v860 = vsel %vm844, 1.0, 0.0
        %v861 = vsel %vm845, 1.0, 0.0
        %v862 = vsel %vm846, 1.0, 0.0
        %v863 = vsel %vm847, 1.0, 0.0
        %v864 = vsel %vm848, 1.0, 0.0
        %v865 = vsel %vm849, 1.0, 0.0
        %v866 = vsel %vm850, 1.0, 0.0
        %v867 = vsel %vm851, 1.0, 0.0
        %v868 = vsel %vm852, 1.0, 0.0
        %v869 = vsel %vm853, 1.0, 0.0
        %v870 = vsel %vm854, 1.0, 0.0
        %v871 = vsel %vm855, 1.0, 0.0
        %v872 = vsel %vm856, 1.0, 0.0
        %v873 = vsel %vm857, 1.0, 0.0
        %874 = vmatprep.subr.mxu0 0.0
        %875 = vmatpush1.msra.mxu0 %v858
        %876 = vmatprep.subr.mxu0 0.0
        %877 = vmatpush1.msra.mxu0 %v859
        %878 = vmatprep.subr.mxu0 0.0
        %879 = vmatpush1.msra.mxu0 %v860
        %880 = vmatprep.subr.mxu0 0.0
        %881 = vmatpush1.msra.mxu0 %v861
        %882 = vmatprep.subr.mxu0 0.0
        %883 = vmatpush1.msra.mxu0 %v862
        %884 = vmatprep.subr.mxu0 0.0
        %885 = vmatpush1.msra.mxu0 %v863
        %886 = vmatprep.subr.mxu0 0.0
        %887 = vmatpush1.msra.mxu0 %v864
        %888 = vmatprep.subr.mxu0 0.0
        %889 = vmatpush1.msra.mxu0 %v865
        %890 = vmatprep.subr.mxu0 0.0
        %891 = vmatpush1.msra.mxu0 %v866
        %892 = vmatprep.subr.mxu0 0.0
        %893 = vmatpush1.msra.mxu0 %v867
        %894 = vmatprep.subr.mxu0 0.0
        %895 = vmatpush1.msra.mxu0 %v868
        %896 = vmatprep.subr.mxu0 0.0
        %897 = vmatpush1.msra.mxu0 %v869
        %898 = vmatprep.subr.mxu0 0.0
        %899 = vmatpush1.msra.mxu0 %v870
        %900 = vmatprep.subr.mxu0 0.0
        %901 = vmatpush1.msra.mxu0 %v871
        %902 = vmatprep.subr.mxu0 0.0
        %903 = vmatpush1.msra.mxu0 %v872
        %904 = vmatprep.subr.mxu0 0.0
        %905 = vmatpush1.msra.mxu0 %v873
        %906 = vmatprep.subr.mxu0 0.0
        %907 = vmatpush1.msra.mxu0 0.0
        %908 = vmatprep.subr.mxu0 0.0
        %909 = vmatpush1.msra.mxu0 0.0
        %910 = vmatprep.subr.mxu0 0.0
        %911 = vmatpush1.msra.mxu0 0.0
        %912 = vmatprep.subr.mxu0 0.0
        %913 = vmatpush1.msra.mxu0 0.0
        %914 = vmatprep.subr.mxu0 0.0
        %915 = vmatpush1.msra.mxu0 0.0
        %916 = vmatprep.subr.mxu0 0.0
        %917 = vmatpush1.msra.mxu0 0.0
        %918 = vmatprep.subr.mxu0 0.0
        %919 = vmatpush1.msra.mxu0 0.0
        %920 = vmatprep.subr.mxu0 0.0
        %921 = vmatpush1.msra.mxu0 0.0
        %922 = vmatprep.subr.mxu0 0.0
        %923 = vmatpush1.msra.mxu0 0.0
        %924 = vmatprep.subr.mxu0 0.0
        %925 = vmatpush1.msra.mxu0 0.0
        %926 = vmatprep.subr.mxu0 0.0
        %927 = vmatpush1.msra.mxu0 0.0
        %928 = vmatprep.subr.mxu0 0.0
        %929 = vmatpush1.msra.mxu0 0.0
        %930 = vmatprep.subr.mxu0 0.0
        %931 = vmatpush1.msra.mxu0 0.0
        %932 = vmatprep.subr.mxu0 0.0
        %933 = vmatpush1.msra.mxu0 0.0
        %934 = vmatprep.subr.mxu0 0.0
        %935 = vmatpush1.msra.mxu0 0.0
        %936 = vmatprep.subr.mxu0 0.0
        %937 = vmatpush1.msra.mxu0 0.0
        %938 = vmatprep.mubr.f32.mxu0 0.0
        %939 = vmatmul.mubr.f32.gmra.mrb[0].mxu0 %v357
        %v940 = vpop.f32.mrb[0].mxu0
        %v941 = vadd.f32 0.0, %v940
        %v942 = vpop.f32.mrb[0].mxu0
        %943 = vdwg.mxu0
        %944 = vmatprep.subr.mxu0 0.0
        %945 = vmatpush1.msra.mxu0 %v822
        %946 = vmatprep.subr.mxu0 0.0
        %947 = vmatpush1.msra.mxu0 %v823
        %948 = vmatprep.subr.mxu0 0.0
        %949 = vmatpush1.msra.mxu0 %v824
        %950 = vmatprep.subr.mxu0 0.0
        %951 = vmatpush1.msra.mxu0 %v825
        %952 = vmatprep.subr.mxu0 0.0
        %953 = vmatpush1.msra.mxu0 %v826
        %954 = vmatprep.subr.mxu0 0.0
        %955 = vmatpush1.msra.mxu0 %v827
        %956 = vmatprep.subr.mxu0 0.0
        %957 = vmatpush1.msra.mxu0 %v828
        %958 = vmatprep.subr.mxu0 0.0
        %959 = vmatpush1.msra.mxu0 %v829
        %960 = vmatprep.subr.mxu0 0.0
        %961 = vmatpush1.msra.mxu0 %v830
        %962 = vmatprep.subr.mxu0 0.0
        %963 = vmatpush1.msra.mxu0 %v831
        %964 = vmatprep.subr.mxu0 0.0
        %965 = vmatpush1.msra.mxu0 %v832
        %966 = vmatprep.subr.mxu0 0.0
        %967 = vmatpush1.msra.mxu0 %v833
        %968 = vmatprep.subr.mxu0 0.0
        %969 = vmatpush1.msra.mxu0 %v834
        %970 = vmatprep.subr.mxu0 0.0
        %971 = vmatpush1.msra.mxu0 %v835
        %972 = vmatprep.subr.mxu0 0.0
        %973 = vmatpush1.msra.mxu0 %v836
        %974 = vmatprep.subr.mxu0 0.0
        %975 = vmatpush1.msra.mxu0 %v837
        %976 = vmatprep.subr.mxu0 0.0
        %977 = vmatpush1.msra.mxu0 0.0
        %978 = vmatprep.subr.mxu0 0.0
        %979 = vmatpush1.msra.mxu0 0.0
        %980 = vmatprep.subr.mxu0 0.0
        %981 = vmatpush1.msra.mxu0 0.0
        %982 = vmatprep.subr.mxu0 0.0
        %983 = vmatpush1.msra.mxu0 0.0
        %984 = vmatprep.subr.mxu0 0.0
        %985 = vmatpush1.msra.mxu0 0.0
        %986 = vmatprep.subr.mxu0 0.0
        %987 = vmatpush1.msra.mxu0 0.0
        %988 = vmatprep.subr.mxu0 0.0
        %989 = vmatpush1.msra.mxu0 0.0
        %990 = vmatprep.subr.mxu0 0.0
        %991 = vmatpush1.msra.mxu0 0.0
        %992 = vmatprep.subr.mxu0 0.0
        %993 = vmatpush1.msra.mxu0 0.0
        %994 = vmatprep.subr.mxu0 0.0
        %995 = vmatpush1.msra.mxu0 0.0
        %996 = vmatprep.subr.mxu0 0.0
        %997 = vmatpush1.msra.mxu0 0.0
        %998 = vmatprep.subr.mxu0 0.0
        %999 = vmatpush1.msra.mxu0 0.0
        %1000 = vmatprep.subr.mxu0 0.0
        %1001 = vmatpush1.msra.mxu0 0.0
        %1002 = vmatprep.subr.mxu0 0.0
        %1003 = vmatpush1.msra.mxu0 0.0
        %1004 = vmatprep.subr.mxu0 0.0
        %1005 = vmatpush1.msra.mxu0 0.0
        %1006 = vmatprep.subr.mxu0 0.0
        %1007 = vmatpush1.msra.mxu0 0.0
        %1008 = vmatprep.mubr.f32.mxu0 0.0
        %1009 = vmatmul.mubr.f32.gmra.mrb[0].mxu0 %v356
        %v1010 = vpop.f32.mrb[0].mxu0
        %v1011 = vadd.f32 %v941, %v1010
        %v1012 = vpop.f32.mrb[0].mxu0
        %1013 = vdwg.mxu0
        %v1014 = vmax.f32 %v801, %v1011
        %v1015 = vlaneseq
        %v1016 = vshrl.u32 %v1015, 7
        %v1017 = vsub.s32 3, %v1016
        %v1018 = vrot.slane %v358, %v1017
        %vm1019 = vcmp.eq.s32.totalorder %v361, %v1018
        %vm1020 = vcmp.eq.s32.totalorder %v362, %v1018
        %vm1021 = vcmp.eq.s32.totalorder %v363, %v1018
        %vm1022 = vcmp.eq.s32.totalorder %v364, %v1018
        %vm1023 = vcmp.eq.s32.totalorder %v365, %v1018
        %vm1024 = vcmp.eq.s32.totalorder %v366, %v1018
        %vm1025 = vcmp.eq.s32.totalorder %v367, %v1018
        %vm1026 = vcmp.eq.s32.totalorder %v368, %v1018
        %vm1027 = vcmp.eq.s32.totalorder %v369, %v1018
        %vm1028 = vcmp.eq.s32.totalorder %v370, %v1018
        %vm1029 = vcmp.eq.s32.totalorder %v371, %v1018
        %vm1030 = vcmp.eq.s32.totalorder %v372, %v1018
        %vm1031 = vcmp.eq.s32.totalorder %v373, %v1018
        %vm1032 = vcmp.eq.s32.totalorder %v374, %v1018
        %vm1033 = vcmp.eq.s32.totalorder %v375, %v1018
        %vm1034 = vcmp.eq.s32.totalorder %v376, %v1018
        %v1035 = vsel %vm1019, 1.0, 0.0
        %v1036 = vsel %vm1020, 1.0, 0.0
        %v1037 = vsel %vm1021, 1.0, 0.0
        %v1038 = vsel %vm1022, 1.0, 0.0
        %v1039 = vsel %vm1023, 1.0, 0.0
        %v1040 = vsel %vm1024, 1.0, 0.0
        %v1041 = vsel %vm1025, 1.0, 0.0
        %v1042 = vsel %vm1026, 1.0, 0.0
        %v1043 = vsel %vm1027, 1.0, 0.0
        %v1044 = vsel %vm1028, 1.0, 0.0
        %v1045 = vsel %vm1029, 1.0, 0.0
        %v1046 = vsel %vm1030, 1.0, 0.0
        %v1047 = vsel %vm1031, 1.0, 0.0
        %v1048 = vsel %vm1032, 1.0, 0.0
        %v1049 = vsel %vm1033, 1.0, 0.0
        %v1050 = vsel %vm1034, 1.0, 0.0
        %v1051 = vlaneseq
        %v1052 = vshrl.u32 %v1051, 7
        %v1053 = vsub.s32 3, %v1052
        %v1054 = vrot.slane %v359, %v1053
        %vm1055 = vcmp.eq.s32.totalorder %v361, %v1054
        %vm1056 = vcmp.eq.s32.totalorder %v362, %v1054
        %vm1057 = vcmp.eq.s32.totalorder %v363, %v1054
        %vm1058 = vcmp.eq.s32.totalorder %v364, %v1054
        %vm1059 = vcmp.eq.s32.totalorder %v365, %v1054
        %vm1060 = vcmp.eq.s32.totalorder %v366, %v1054
        %vm1061 = vcmp.eq.s32.totalorder %v367, %v1054
        %vm1062 = vcmp.eq.s32.totalorder %v368, %v1054
        %vm1063 = vcmp.eq.s32.totalorder %v369, %v1054
        %vm1064 = vcmp.eq.s32.totalorder %v370, %v1054
        %vm1065 = vcmp.eq.s32.totalorder %v371, %v1054
        %vm1066 = vcmp.eq.s32.totalorder %v372, %v1054
        %vm1067 = vcmp.eq.s32.totalorder %v373, %v1054
        %vm1068 = vcmp.eq.s32.totalorder %v374, %v1054
        %vm1069 = vcmp.eq.s32.totalorder %v375, %v1054
        %vm1070 = vcmp.eq.s32.totalorder %v376, %v1054
        %v1071 = vsel %vm1055, 1.0, 0.0
        %v1072 = vsel %vm1056, 1.0, 0.0
        %v1073 = vsel %vm1057, 1.0, 0.0
        %v1074 = vsel %vm1058, 1.0, 0.0
        %v1075 = vsel %vm1059, 1.0, 0.0
        %v1076 = vsel %vm1060, 1.0, 0.0
        %v1077 = vsel %vm1061, 1.0, 0.0
        %v1078 = vsel %vm1062, 1.0, 0.0
        %v1079 = vsel %vm1063, 1.0, 0.0
        %v1080 = vsel %vm1064, 1.0, 0.0
        %v1081 = vsel %vm1065, 1.0, 0.0
        %v1082 = vsel %vm1066, 1.0, 0.0
        %v1083 = vsel %vm1067, 1.0, 0.0
        %v1084 = vsel %vm1068, 1.0, 0.0
        %v1085 = vsel %vm1069, 1.0, 0.0
        %v1086 = vsel %vm1070, 1.0, 0.0
        %1087 = vmatprep.subr.mxu0 0.0
        %1088 = vmatpush1.msra.mxu0 %v1071
        %1089 = vmatprep.subr.mxu0 0.0
        %1090 = vmatpush1.msra.mxu0 %v1072
        %1091 = vmatprep.subr.mxu0 0.0
        %1092 = vmatpush1.msra.mxu0 %v1073
        %1093 = vmatprep.subr.mxu0 0.0
        %1094 = vmatpush1.msra.mxu0 %v1074
        %1095 = vmatprep.subr.mxu0 0.0
        %1096 = vmatpush1.msra.mxu0 %v1075
        %1097 = vmatprep.subr.mxu0 0.0
        %1098 = vmatpush1.msra.mxu0 %v1076
        %1099 = vmatprep.subr.mxu0 0.0
        %1100 = vmatpush1.msra.mxu0 %v1077
        %1101 = vmatprep.subr.mxu0 0.0
        %1102 = vmatpush1.msra.mxu0 %v1078
        %1103 = vmatprep.subr.mxu0 0.0
        %1104 = vmatpush1.msra.mxu0 %v1079
        %1105 = vmatprep.subr.mxu0 0.0
        %1106 = vmatpush1.msra.mxu0 %v1080
        %1107 = vmatprep.subr.mxu0 0.0
        %1108 = vmatpush1.msra.mxu0 %v1081
        %1109 = vmatprep.subr.mxu0 0.0
        %1110 = vmatpush1.msra.mxu0 %v1082
        %1111 = vmatprep.subr.mxu0 0.0
        %1112 = vmatpush1.msra.mxu0 %v1083
        %1113 = vmatprep.subr.mxu0 0.0
        %1114 = vmatpush1.msra.mxu0 %v1084
        %1115 = vmatprep.subr.mxu0 0.0
        %1116 = vmatpush1.msra.mxu0 %v1085
        %1117 = vmatprep.subr.mxu0 0.0
        %1118 = vmatpush1.msra.mxu0 %v1086
        %1119 = vmatprep.subr.mxu0 0.0
        %1120 = vmatpush1.msra.mxu0 0.0
        %1121 = vmatprep.subr.mxu0 0.0
        %1122 = vmatpush1.msra.mxu0 0.0
        %1123 = vmatprep.subr.mxu0 0.0
        %1124 = vmatpush1.msra.mxu0 0.0
        %1125 = vmatprep.subr.mxu0 0.0
        %1126 = vmatpush1.msra.mxu0 0.0
        %1127 = vmatprep.subr.mxu0 0.0
        %1128 = vmatpush1.msra.mxu0 0.0
        %1129 = vmatprep.subr.mxu0 0.0
        %1130 = vmatpush1.msra.mxu0 0.0
        %1131 = vmatprep.subr.mxu0 0.0
        %1132 = vmatpush1.msra.mxu0 0.0
        %1133 = vmatprep.subr.mxu0 0.0
        %1134 = vmatpush1.msra.mxu0 0.0
        %1135 = vmatprep.subr.mxu0 0.0
        %1136 = vmatpush1.msra.mxu0 0.0
        %1137 = vmatprep.subr.mxu0 0.0
        %1138 = vmatpush1.msra.mxu0 0.0
        %1139 = vmatprep.subr.mxu0 0.0
        %1140 = vmatpush1.msra.mxu0 0.0
        %1141 = vmatprep.subr.mxu0 0.0
        %1142 = vmatpush1.msra.mxu0 0.0
        %1143 = vmatprep.subr.mxu0 0.0
        %1144 = vmatpush1.msra.mxu0 0.0
        %1145 = vmatprep.subr.mxu0 0.0
        %1146 = vmatpush1.msra.mxu0 0.0
        %1147 = vmatprep.subr.mxu0 0.0
        %1148 = vmatpush1.msra.mxu0 0.0
        %1149 = vmatprep.subr.mxu0 0.0
        %1150 = vmatpush1.msra.mxu0 0.0
        %1151 = vmatprep.mubr.f32.mxu0 0.0
        %1152 = vmatmul.mubr.f32.gmra.mrb[0].mxu0 %v357
        %v1153 = vpop.f32.mrb[0].mxu0
        %v1154 = vadd.f32 0.0, %v1153
        %v1155 = vpop.f32.mrb[0].mxu0
        %1156 = vdwg.mxu0
        %1157 = vmatprep.subr.mxu0 0.0
        %1158 = vmatpush1.msra.mxu0 %v1035
        %1159 = vmatprep.subr.mxu0 0.0
        %1160 = vmatpush1.msra.mxu0 %v1036
        %1161 = vmatprep.subr.mxu0 0.0
        %1162 = vmatpush1.msra.mxu0 %v1037
        %1163 = vmatprep.subr.mxu0 0.0
        %1164 = vmatpush1.msra.mxu0 %v1038
        %1165 = vmatprep.subr.mxu0 0.0
        %1166 = vmatpush1.msra.mxu0 %v1039
        %1167 = vmatprep.subr.mxu0 0.0
        %1168 = vmatpush1.msra.mxu0 %v1040
        %1169 = vmatprep.subr.mxu0 0.0
        %1170 = vmatpush1.msra.mxu0 %v1041
        %1171 = vmatprep.subr.mxu0 0.0
        %1172 = vmatpush1.msra.mxu0 %v1042
        %1173 = vmatprep.subr.mxu0 0.0
        %1174 = vmatpush1.msra.mxu0 %v1043
        %1175 = vmatprep.subr.mxu0 0.0
        %1176 = vmatpush1.msra.mxu0 %v1044
        %1177 = vmatprep.subr.mxu0 0.0
        %1178 = vmatpush1.msra.mxu0 %v1045
        %1179 = vmatprep.subr.mxu0 0.0
        %1180 = vmatpush1.msra.mxu0 %v1046
        %1181 = vmatprep.subr.mxu0 0.0
        %1182 = vmatpush1.msra.mxu0 %v1047
        %1183 = vmatprep.subr.mxu0 0.0
        %1184 = vmatpush1.msra.mxu0 %v1048
        %1185 = vmatprep.subr.mxu0 0.0
        %1186 = vmatpush1.msra.mxu0 %v1049
        %1187 = vmatprep.subr.mxu0 0.0
        %1188 = vmatpush1.msra.mxu0 %v1050
        %1189 = vmatprep.subr.mxu0 0.0
        %1190 = vmatpush1.msra.mxu0 0.0
        %1191 = vmatprep.subr.mxu0 0.0
        %1192 = vmatpush1.msra.mxu0 0.0
        %1193 = vmatprep.subr.mxu0 0.0
        %1194 = vmatpush1.msra.mxu0 0.0
        %1195 = vmatprep.subr.mxu0 0.0
        %1196 = vmatpush1.msra.mxu0 0.0
        %1197 = vmatprep.subr.mxu0 0.0
        %1198 = vmatpush1.msra.mxu0 0.0
        %1199 = vmatprep.subr.mxu0 0.0
        %1200 = vmatpush1.msra.mxu0 0.0
        %1201 = vmatprep.subr.mxu0 0.0
        %1202 = vmatpush1.msra.mxu0 0.0
        %1203 = vmatprep.subr.mxu0 0.0
        %1204 = vmatpush1.msra.mxu0 0.0
        %1205 = vmatprep.subr.mxu0 0.0
        %1206 = vmatpush1.msra.mxu0 0.0
        %1207 = vmatprep.subr.mxu0 0.0
        %1208 = vmatpush1.msra.mxu0 0.0
        %1209 = vmatprep.subr.mxu0 0.0
        %1210 = vmatpush1.msra.mxu0 0.0
        %1211 = vmatprep.subr.mxu0 0.0
        %1212 = vmatpush1.msra.mxu0 0.0
        %1213 = vmatprep.subr.mxu0 0.0
        %1214 = vmatpush1.msra.mxu0 0.0
        %1215 = vmatprep.subr.mxu0 0.0
        %1216 = vmatpush1.msra.mxu0 0.0
        %1217 = vmatprep.subr.mxu0 0.0
        %1218 = vmatpush1.msra.mxu0 0.0
        %1219 = vmatprep.subr.mxu0 0.0
        %1220 = vmatpush1.msra.mxu0 0.0
        %1221 = vmatprep.mubr.f32.mxu0 0.0
        %1222 = vmatmul.mubr.f32.gmra.mrb[0].mxu0 %v356
        %v1223 = vpop.f32.mrb[0].mxu0
        %v1224 = vadd.f32 %v1154, %v1223
        %v1225 = vpop.f32.mrb[0].mxu0
        %1226 = vdwg.mxu0
        %v1227 = vmax.f32 %v1014, %v1224
        %v1228 = vlaneseq
        %v1229 = vshrl.u32 %v1228, 7
        %v1230 = vsub.s32 4, %v1229
        %v1231 = vrot.slane %v358, %v1230
        %vm1232 = vcmp.eq.s32.totalorder %v361, %v1231
        %vm1233 = vcmp.eq.s32.totalorder %v362, %v1231
        %vm1234 = vcmp.eq.s32.totalorder %v363, %v1231
        %vm1235 = vcmp.eq.s32.totalorder %v364, %v1231
        %vm1236 = vcmp.eq.s32.totalorder %v365, %v1231
        %vm1237 = vcmp.eq.s32.totalorder %v366, %v1231
        %vm1238 = vcmp.eq.s32.totalorder %v367, %v1231
        %vm1239 = vcmp.eq.s32.totalorder %v368, %v1231
        %vm1240 = vcmp.eq.s32.totalorder %v369, %v1231
        %vm1241 = vcmp.eq.s32.totalorder %v370, %v1231
        %vm1242 = vcmp.eq.s32.totalorder %v371, %v1231
        %vm1243 = vcmp.eq.s32.totalorder %v372, %v1231
        %vm1244 = vcmp.eq.s32.totalorder %v373, %v1231
        %vm1245 = vcmp.eq.s32.totalorder %v374, %v1231
        %vm1246 = vcmp.eq.s32.totalorder %v375, %v1231
        %vm1247 = vcmp.eq.s32.totalorder %v376, %v1231
        %v1248 = vsel %vm1232, 1.0, 0.0
        %v1249 = vsel %vm1233, 1.0, 0.0
        %v1250 = vsel %vm1234, 1.0, 0.0
        %v1251 = vsel %vm1235, 1.0, 0.0
        %v1252 = vsel %vm1236, 1.0, 0.0
        %v1253 = vsel %vm1237, 1.0, 0.0
        %v1254 = vsel %vm1238, 1.0, 0.0
        %v1255 = vsel %vm1239, 1.0, 0.0
        %v1256 = vsel %vm1240, 1.0, 0.0
        %v1257 = vsel %vm1241, 1.0, 0.0
        %v1258 = vsel %vm1242, 1.0, 0.0
        %v1259 = vsel %vm1243, 1.0, 0.0
        %v1260 = vsel %vm1244, 1.0, 0.0
        %v1261 = vsel %vm1245, 1.0, 0.0
        %v1262 = vsel %vm1246, 1.0, 0.0
        %v1263 = vsel %vm1247, 1.0, 0.0
        %v1264 = vlaneseq
        %v1265 = vshrl.u32 %v1264, 7
        %v1266 = vsub.s32 4, %v1265
        %v1267 = vrot.slane %v359, %v1266
        %vm1268 = vcmp.eq.s32.totalorder %v361, %v1267
        %vm1269 = vcmp.eq.s32.totalorder %v362, %v1267
        %vm1270 = vcmp.eq.s32.totalorder %v363, %v1267
        %vm1271 = vcmp.eq.s32.totalorder %v364, %v1267
        %vm1272 = vcmp.eq.s32.totalorder %v365, %v1267
        %vm1273 = vcmp.eq.s32.totalorder %v366, %v1267
        %vm1274 = vcmp.eq.s32.totalorder %v367, %v1267
        %vm1275 = vcmp.eq.s32.totalorder %v368, %v1267
        %vm1276 = vcmp.eq.s32.totalorder %v369, %v1267
        %vm1277 = vcmp.eq.s32.totalorder %v370, %v1267
        %vm1278 = vcmp.eq.s32.totalorder %v371, %v1267
        %vm1279 = vcmp.eq.s32.totalorder %v372, %v1267
        %vm1280 = vcmp.eq.s32.totalorder %v373, %v1267
        %vm1281 = vcmp.eq.s32.totalorder %v374, %v1267
        %vm1282 = vcmp.eq.s32.totalorder %v375, %v1267
        %vm1283 = vcmp.eq.s32.totalorder %v376, %v1267
        %v1284 = vsel %vm1268, 1.0, 0.0
        %v1285 = vsel %vm1269, 1.0, 0.0
        %v1286 = vsel %vm1270, 1.0, 0.0
        %v1287 = vsel %vm1271, 1.0, 0.0
        %v1288 = vsel %vm1272, 1.0, 0.0
        %v1289 = vsel %vm1273, 1.0, 0.0
        %v1290 = vsel %vm1274, 1.0, 0.0
        %v1291 = vsel %vm1275, 1.0, 0.0
        %v1292 = vsel %vm1276, 1.0, 0.0
        %v1293 = vsel %vm1277, 1.0, 0.0
        %v1294 = vsel %vm1278, 1.0, 0.0
        %v1295 = vsel %vm1279, 1.0, 0.0
        %v1296 = vsel %vm1280, 1.0, 0.0
        %v1297 = vsel %vm1281, 1.0, 0.0
        %v1298 = vsel %vm1282, 1.0, 0.0
        %v1299 = vsel %vm1283, 1.0, 0.0
        %1300 = vmatprep.subr.mxu0 0.0
        %1301 = vmatpush1.msra.mxu0 %v1284
        %1302 = vmatprep.subr.mxu0 0.0
        %1303 = vmatpush1.msra.mxu0 %v1285
        %1304 = vmatprep.subr.mxu0 0.0
        %1305 = vmatpush1.msra.mxu0 %v1286
        %1306 = vmatprep.subr.mxu0 0.0
        %1307 = vmatpush1.msra.mxu0 %v1287
        %1308 = vmatprep.subr.mxu0 0.0
        %1309 = vmatpush1.msra.mxu0 %v1288
        %1310 = vmatprep.subr.mxu0 0.0
        %1311 = vmatpush1.msra.mxu0 %v1289
        %1312 = vmatprep.subr.mxu0 0.0
        %1313 = vmatpush1.msra.mxu0 %v1290
        %1314 = vmatprep.subr.mxu0 0.0
        %1315 = vmatpush1.msra.mxu0 %v1291
        %1316 = vmatprep.subr.mxu0 0.0
        %1317 = vmatpush1.msra.mxu0 %v1292
        %1318 = vmatprep.subr.mxu0 0.0
        %1319 = vmatpush1.msra.mxu0 %v1293
        %1320 = vmatprep.subr.mxu0 0.0
        %1321 = vmatpush1.msra.mxu0 %v1294
        %1322 = vmatprep.subr.mxu0 0.0
        %1323 = vmatpush1.msra.mxu0 %v1295
        %1324 = vmatprep.subr.mxu0 0.0
        %1325 = vmatpush1.msra.mxu0 %v1296
        %1326 = vmatprep.subr.mxu0 0.0
        %1327 = vmatpush1.msra.mxu0 %v1297
        %1328 = vmatprep.subr.mxu0 0.0
        %1329 = vmatpush1.msra.mxu0 %v1298
        %1330 = vmatprep.subr.mxu0 0.0
        %1331 = vmatpush1.msra.mxu0 %v1299
        %1332 = vmatprep.subr.mxu0 0.0
        %1333 = vmatpush1.msra.mxu0 0.0
        %1334 = vmatprep.subr.mxu0 0.0
        %1335 = vmatpush1.msra.mxu0 0.0
        %1336 = vmatprep.subr.mxu0 0.0
        %1337 = vmatpush1.msra.mxu0 0.0
        %1338 = vmatprep.subr.mxu0 0.0
        %1339 = vmatpush1.msra.mxu0 0.0
        %1340 = vmatprep.subr.mxu0 0.0
        %1341 = vmatpush1.msra.mxu0 0.0
        %1342 = vmatprep.subr.mxu0 0.0
        %1343 = vmatpush1.msra.mxu0 0.0
        %1344 = vmatprep.subr.mxu0 0.0
        %1345 = vmatpush1.msra.mxu0 0.0
        %1346 = vmatprep.subr.mxu0 0.0
        %1347 = vmatpush1.msra.mxu0 0.0
        %1348 = vmatprep.subr.mxu0 0.0
        %1349 = vmatpush1.msra.mxu0 0.0
        %1350 = vmatprep.subr.mxu0 0.0
        %1351 = vmatpush1.msra.mxu0 0.0
        %1352 = vmatprep.subr.mxu0 0.0
        %1353 = vmatpush1.msra.mxu0 0.0
        %1354 = vmatprep.subr.mxu0 0.0
        %1355 = vmatpush1.msra.mxu0 0.0
        %1356 = vmatprep.subr.mxu0 0.0
        %1357 = vmatpush1.msra.mxu0 0.0
        %1358 = vmatprep.subr.mxu0 0.0
        %1359 = vmatpush1.msra.mxu0 0.0
        %1360 = vmatprep.subr.mxu0 0.0
        %1361 = vmatpush1.msra.mxu0 0.0
        %1362 = vmatprep.subr.mxu0 0.0
        %1363 = vmatpush1.msra.mxu0 0.0
        %1364 = vmatprep.mubr.f32.mxu0 0.0
        %1365 = vmatmul.mubr.f32.gmra.mrb[0].mxu0 %v357
        %v1366 = vpop.f32.mrb[0].mxu0
        %v1367 = vadd.f32 0.0, %v1366
        %v1368 = vpop.f32.mrb[0].mxu0
        %1369 = vdwg.mxu0
        %1370 = vmatprep.subr.mxu0 0.0
        %1371 = vmatpush1.msra.mxu0 %v1248
        %1372 = vmatprep.subr.mxu0 0.0
        %1373 = vmatpush1.msra.mxu0 %v1249
        %1374 = vmatprep.subr.mxu0 0.0
        %1375 = vmatpush1.msra.mxu0 %v1250
        %1376 = vmatprep.subr.mxu0 0.0
        %1377 = vmatpush1.msra.mxu0 %v1251
        %1378 = vmatprep.subr.mxu0 0.0
        %1379 = vmatpush1.msra.mxu0 %v1252
        %1380 = vmatprep.subr.mxu0 0.0
        %1381 = vmatpush1.msra.mxu0 %v1253
        %1382 = vmatprep.subr.mxu0 0.0
        %1383 = vmatpush1.msra.mxu0 %v1254
        %1384 = vmatprep.subr.mxu0 0.0
        %1385 = vmatpush1.msra.mxu0 %v1255
        %1386 = vmatprep.subr.mxu0 0.0
        %1387 = vmatpush1.msra.mxu0 %v1256
        %1388 = vmatprep.subr.mxu0 0.0
        %1389 = vmatpush1.msra.mxu0 %v1257
        %1390 = vmatprep.subr.mxu0 0.0
        %1391 = vmatpush1.msra.mxu0 %v1258
        %1392 = vmatprep.subr.mxu0 0.0
        %1393 = vmatpush1.msra.mxu0 %v1259
        %1394 = vmatprep.subr.mxu0 0.0
        %1395 = vmatpush1.msra.mxu0 %v1260
        %1396 = vmatprep.subr.mxu0 0.0
        %1397 = vmatpush1.msra.mxu0 %v1261
        %1398 = vmatprep.subr.mxu0 0.0
        %1399 = vmatpush1.msra.mxu0 %v1262
        %1400 = vmatprep.subr.mxu0 0.0
        %1401 = vmatpush1.msra.mxu0 %v1263
        %1402 = vmatprep.subr.mxu0 0.0
        %1403 = vmatpush1.msra.mxu0 0.0
        %1404 = vmatprep.subr.mxu0 0.0
        %1405 = vmatpush1.msra.mxu0 0.0
        %1406 = vmatprep.subr.mxu0 0.0
        %1407 = vmatpush1.msra.mxu0 0.0
        %1408 = vmatprep.subr.mxu0 0.0
        %1409 = vmatpush1.msra.mxu0 0.0
        %1410 = vmatprep.subr.mxu0 0.0
        %1411 = vmatpush1.msra.mxu0 0.0
        %1412 = vmatprep.subr.mxu0 0.0
        %1413 = vmatpush1.msra.mxu0 0.0
        %1414 = vmatprep.subr.mxu0 0.0
        %1415 = vmatpush1.msra.mxu0 0.0
        %1416 = vmatprep.subr.mxu0 0.0
        %1417 = vmatpush1.msra.mxu0 0.0
        %1418 = vmatprep.subr.mxu0 0.0
        %1419 = vmatpush1.msra.mxu0 0.0
        %1420 = vmatprep.subr.mxu0 0.0
        %1421 = vmatpush1.msra.mxu0 0.0
        %1422 = vmatprep.subr.mxu0 0.0
        %1423 = vmatpush1.msra.mxu0 0.0
        %1424 = vmatprep.subr.mxu0 0.0
        %1425 = vmatpush1.msra.mxu0 0.0
        %1426 = vmatprep.subr.mxu0 0.0
        %1427 = vmatpush1.msra.mxu0 0.0
        %1428 = vmatprep.subr.mxu0 0.0
        %1429 = vmatpush1.msra.mxu0 0.0
        %1430 = vmatprep.subr.mxu0 0.0
        %1431 = vmatpush1.msra.mxu0 0.0
        %1432 = vmatprep.subr.mxu0 0.0
        %1433 = vmatpush1.msra.mxu0 0.0
        %1434 = vmatprep.mubr.f32.mxu0 0.0
        %1435 = vmatmul.mubr.f32.gmra.mrb[0].mxu0 %v356
        %v1436 = vpop.f32.mrb[0].mxu0
        %v1437 = vadd.f32 %v1367, %v1436
        %v1438 = vpop.f32.mrb[0].mxu0
        %1439 = vdwg.mxu0
        %v1440 = vmax.f32 %v1227, %v1437
        %v1441 = vlaneseq
        %v1442 = vshrl.u32 %v1441, 7
        %v1443 = vsub.s32 5, %v1442
        %v1444 = vrot.slane %v358, %v1443
        %vm1445 = vcmp.eq.s32.totalorder %v361, %v1444
        %vm1446 = vcmp.eq.s32.totalorder %v362, %v1444
        %vm1447 = vcmp.eq.s32.totalorder %v363, %v1444
        %vm1448 = vcmp.eq.s32.totalorder %v364, %v1444
        %vm1449 = vcmp.eq.s32.totalorder %v365, %v1444
        %vm1450 = vcmp.eq.s32.totalorder %v366, %v1444
        %vm1451 = vcmp.eq.s32.totalorder %v367, %v1444
        %vm1452 = vcmp.eq.s32.totalorder %v368, %v1444
        %vm1453 = vcmp.eq.s32.totalorder %v369, %v1444
        %vm1454 = vcmp.eq.s32.totalorder %v370, %v1444
        %vm1455 = vcmp.eq.s32.totalorder %v371, %v1444
        %vm1456 = vcmp.eq.s32.totalorder %v372, %v1444
        %vm1457 = vcmp.eq.s32.totalorder %v373, %v1444
        %vm1458 = vcmp.eq.s32.totalorder %v374, %v1444
        %vm1459 = vcmp.eq.s32.totalorder %v375, %v1444
        %vm1460 = vcmp.eq.s32.totalorder %v376, %v1444
        %v1461 = vsel %vm1445, 1.0, 0.0
        %v1462 = vsel %vm1446, 1.0, 0.0
        %v1463 = vsel %vm1447, 1.0, 0.0
        %v1464 = vsel %vm1448, 1.0, 0.0
        %v1465 = vsel %vm1449, 1.0, 0.0
        %v1466 = vsel %vm1450, 1.0, 0.0
        %v1467 = vsel %vm1451, 1.0, 0.0
        %v1468 = vsel %vm1452, 1.0, 0.0
        %v1469 = vsel %vm1453, 1.0, 0.0
        %v1470 = vsel %vm1454, 1.0, 0.0
        %v1471 = vsel %vm1455, 1.0, 0.0
        %v1472 = vsel %vm1456, 1.0, 0.0
        %v1473 = vsel %vm1457, 1.0, 0.0
        %v1474 = vsel %vm1458, 1.0, 0.0
        %v1475 = vsel %vm1459, 1.0, 0.0
        %v1476 = vsel %vm1460, 1.0, 0.0
        %v1477 = vlaneseq
        %v1478 = vshrl.u32 %v1477, 7
        %v1479 = vsub.s32 5, %v1478
        %v1480 = vrot.slane %v359, %v1479
        %vm1481 = vcmp.eq.s32.totalorder %v361, %v1480
        %vm1482 = vcmp.eq.s32.totalorder %v362, %v1480
        %vm1483 = vcmp.eq.s32.totalorder %v363, %v1480
        %vm1484 = vcmp.eq.s32.totalorder %v364, %v1480
        %vm1485 = vcmp.eq.s32.totalorder %v365, %v1480
        %vm1486 = vcmp.eq.s32.totalorder %v366, %v1480
        %vm1487 = vcmp.eq.s32.totalorder %v367, %v1480
        %vm1488 = vcmp.eq.s32.totalorder %v368, %v1480
        %vm1489 = vcmp.eq.s32.totalorder %v369, %v1480
        %vm1490 = vcmp.eq.s32.totalorder %v370, %v1480
        %vm1491 = vcmp.eq.s32.totalorder %v371, %v1480
        %vm1492 = vcmp.eq.s32.totalorder %v372, %v1480
        %vm1493 = vcmp.eq.s32.totalorder %v373, %v1480
        %vm1494 = vcmp.eq.s32.totalorder %v374, %v1480
        %vm1495 = vcmp.eq.s32.totalorder %v375, %v1480
        %vm1496 = vcmp.eq.s32.totalorder %v376, %v1480
        %v1497 = vsel %vm1481, 1.0, 0.0
        %v1498 = vsel %vm1482, 1.0, 0.0
        %v1499 = vsel %vm1483, 1.0, 0.0
        %v1500 = vsel %vm1484, 1.0, 0.0
        %v1501 = vsel %vm1485, 1.0, 0.0
        %v1502 = vsel %vm1486, 1.0, 0.0
        %v1503 = vsel %vm1487, 1.0, 0.0
        %v1504 = vsel %vm1488, 1.0, 0.0
        %v1505 = vsel %vm1489, 1.0, 0.0
        %v1506 = vsel %vm1490, 1.0, 0.0
        %v1507 = vsel %vm1491, 1.0, 0.0
        %v1508 = vsel %vm1492, 1.0, 0.0
        %v1509 = vsel %vm1493, 1.0, 0.0
        %v1510 = vsel %vm1494, 1.0, 0.0
        %v1511 = vsel %vm1495, 1.0, 0.0
        %v1512 = vsel %vm1496, 1.0, 0.0
        %1513 = vmatprep.subr.mxu0 0.0
        %1514 = vmatpush1.msra.mxu0 %v1497
        %1515 = vmatprep.subr.mxu0 0.0
        %1516 = vmatpush1.msra.mxu0 %v1498
        %1517 = vmatprep.subr.mxu0 0.0
        %1518 = vmatpush1.msra.mxu0 %v1499
        %1519 = vmatprep.subr.mxu0 0.0
        %1520 = vmatpush1.msra.mxu0 %v1500
        %1521 = vmatprep.subr.mxu0 0.0
        %1522 = vmatpush1.msra.mxu0 %v1501
        %1523 = vmatprep.subr.mxu0 0.0
        %1524 = vmatpush1.msra.mxu0 %v1502
        %1525 = vmatprep.subr.mxu0 0.0
        %1526 = vmatpush1.msra.mxu0 %v1503
        %1527 = vmatprep.subr.mxu0 0.0
        %1528 = vmatpush1.msra.mxu0 %v1504
        %1529 = vmatprep.subr.mxu0 0.0
        %1530 = vmatpush1.msra.mxu0 %v1505
        %1531 = vmatprep.subr.mxu0 0.0
        %1532 = vmatpush1.msra.mxu0 %v1506
        %1533 = vmatprep.subr.mxu0 0.0
        %1534 = vmatpush1.msra.mxu0 %v1507
        %1535 = vmatprep.subr.mxu0 0.0
        %1536 = vmatpush1.msra.mxu0 %v1508
        %1537 = vmatprep.subr.mxu0 0.0
        %1538 = vmatpush1.msra.mxu0 %v1509
        %1539 = vmatprep.subr.mxu0 0.0
        %1540 = vmatpush1.msra.mxu0 %v1510
        %1541 = vmatprep.subr.mxu0 0.0
        %1542 = vmatpush1.msra.mxu0 %v1511
        %1543 = vmatprep.subr.mxu0 0.0
        %1544 = vmatpush1.msra.mxu0 %v1512
        %1545 = vmatprep.subr.mxu0 0.0
        %1546 = vmatpush1.msra.mxu0 0.0
        %1547 = vmatprep.subr.mxu0 0.0
        %1548 = vmatpush1.msra.mxu0 0.0
        %1549 = vmatprep.subr.mxu0 0.0
        %1550 = vmatpush1.msra.mxu0 0.0
        %1551 = vmatprep.subr.mxu0 0.0
        %1552 = vmatpush1.msra.mxu0 0.0
        %1553 = vmatprep.subr.mxu0 0.0
        %1554 = vmatpush1.msra.mxu0 0.0
        %1555 = vmatprep.subr.mxu0 0.0
        %1556 = vmatpush1.msra.mxu0 0.0
        %1557 = vmatprep.subr.mxu0 0.0
        %1558 = vmatpush1.msra.mxu0 0.0
        %1559 = vmatprep.subr.mxu0 0.0
        %1560 = vmatpush1.msra.mxu0 0.0
        %1561 = vmatprep.subr.mxu0 0.0
        %1562 = vmatpush1.msra.mxu0 0.0
        %1563 = vmatprep.subr.mxu0 0.0
        %1564 = vmatpush1.msra.mxu0 0.0
        %1565 = vmatprep.subr.mxu0 0.0
        %1566 = vmatpush1.msra.mxu0 0.0
        %1567 = vmatprep.subr.mxu0 0.0
        %1568 = vmatpush1.msra.mxu0 0.0
        %1569 = vmatprep.subr.mxu0 0.0
        %1570 = vmatpush1.msra.mxu0 0.0
        %1571 = vmatprep.subr.mxu0 0.0
        %1572 = vmatpush1.msra.mxu0 0.0
        %1573 = vmatprep.subr.mxu0 0.0
        %1574 = vmatpush1.msra.mxu0 0.0
        %1575 = vmatprep.subr.mxu0 0.0
        %1576 = vmatpush1.msra.mxu0 0.0
        %1577 = vmatprep.mubr.f32.mxu0 0.0
        %1578 = vmatmul.mubr.f32.gmra.mrb[0].mxu0 %v357
        %v1579 = vpop.f32.mrb[0].mxu0
        %v1580 = vadd.f32 0.0, %v1579
        %v1581 = vpop.f32.mrb[0].mxu0
        %1582 = vdwg.mxu0
        %1583 = vmatprep.subr.mxu0 0.0
        %1584 = vmatpush1.msra.mxu0 %v1461
        %1585 = vmatprep.subr.mxu0 0.0
        %1586 = vmatpush1.msra.mxu0 %v1462
        %1587 = vmatprep.subr.mxu0 0.0
        %1588 = vmatpush1.msra.mxu0 %v1463
        %1589 = vmatprep.subr.mxu0 0.0
        %1590 = vmatpush1.msra.mxu0 %v1464
        %1591 = vmatprep.subr.mxu0 0.0
        %1592 = vmatpush1.msra.mxu0 %v1465
        %1593 = vmatprep.subr.mxu0 0.0
        %1594 = vmatpush1.msra.mxu0 %v1466
        %1595 = vmatprep.subr.mxu0 0.0
        %1596 = vmatpush1.msra.mxu0 %v1467
        %1597 = vmatprep.subr.mxu0 0.0
        %1598 = vmatpush1.msra.mxu0 %v1468
        %1599 = vmatprep.subr.mxu0 0.0
        %1600 = vmatpush1.msra.mxu0 %v1469
        %1601 = vmatprep.subr.mxu0 0.0
        %1602 = vmatpush1.msra.mxu0 %v1470
        %1603 = vmatprep.subr.mxu0 0.0
        %1604 = vmatpush1.msra.mxu0 %v1471
        %1605 = vmatprep.subr.mxu0 0.0
        %1606 = vmatpush1.msra.mxu0 %v1472
        %1607 = vmatprep.subr.mxu0 0.0
        %1608 = vmatpush1.msra.mxu0 %v1473
        %1609 = vmatprep.subr.mxu0 0.0
        %1610 = vmatpush1.msra.mxu0 %v1474
        %1611 = vmatprep.subr.mxu0 0.0
        %1612 = vmatpush1.msra.mxu0 %v1475
        %1613 = vmatprep.subr.mxu0 0.0
        %1614 = vmatpush1.msra.mxu0 %v1476
        %1615 = vmatprep.subr.mxu0 0.0
        %1616 = vmatpush1.msra.mxu0 0.0
        %1617 = vmatprep.subr.mxu0 0.0
        %1618 = vmatpush1.msra.mxu0 0.0
        %1619 = vmatprep.subr.mxu0 0.0
        %1620 = vmatpush1.msra.mxu0 0.0
        %1621 = vmatprep.subr.mxu0 0.0
        %1622 = vmatpush1.msra.mxu0 0.0
        %1623 = vmatprep.subr.mxu0 0.0
        %1624 = vmatpush1.msra.mxu0 0.0
        %1625 = vmatprep.subr.mxu0 0.0
        %1626 = vmatpush1.msra.mxu0 0.0
        %1627 = vmatprep.subr.mxu0 0.0
        %1628 = vmatpush1.msra.mxu0 0.0
        %1629 = vmatprep.subr.mxu0 0.0
        %1630 = vmatpush1.msra.mxu0 0.0
        %1631 = vmatprep.subr.mxu0 0.0
        %1632 = vmatpush1.msra.mxu0 0.0
        %1633 = vmatprep.subr.mxu0 0.0
        %1634 = vmatpush1.msra.mxu0 0.0
        %1635 = vmatprep.subr.mxu0 0.0
        %1636 = vmatpush1.msra.mxu0 0.0
        %1637 = vmatprep.subr.mxu0 0.0
        %1638 = vmatpush1.msra.mxu0 0.0
        %1639 = vmatprep.subr.mxu0 0.0
        %1640 = vmatpush1.msra.mxu0 0.0
        %1641 = vmatprep.subr.mxu0 0.0
        %1642 = vmatpush1.msra.mxu0 0.0
        %1643 = vmatprep.subr.mxu0 0.0
        %1644 = vmatpush1.msra.mxu0 0.0
        %1645 = vmatprep.subr.mxu0 0.0
        %1646 = vmatpush1.msra.mxu0 0.0
        %1647 = vmatprep.mubr.f32.mxu0 0.0
        %1648 = vmatmul.mubr.f32.gmra.mrb[0].mxu0 %v356
        %v1649 = vpop.f32.mrb[0].mxu0
        %v1650 = vadd.f32 %v1580, %v1649
        %v1651 = vpop.f32.mrb[0].mxu0
        %1652 = vdwg.mxu0
        %v1653 = vmax.f32 %v1440, %v1650
        %v1654 = vlaneseq
        %v1655 = vshrl.u32 %v1654, 7
        %v1656 = vsub.s32 6, %v1655
        %v1657 = vrot.slane %v358, %v1656
        %vm1658 = vcmp.eq.s32.totalorder %v361, %v1657
        %vm1659 = vcmp.eq.s32.totalorder %v362, %v1657
        %vm1660 = vcmp.eq.s32.totalorder %v363, %v1657
        %vm1661 = vcmp.eq.s32.totalorder %v364, %v1657
        %vm1662 = vcmp.eq.s32.totalorder %v365, %v1657
        %vm1663 = vcmp.eq.s32.totalorder %v366, %v1657
        %vm1664 = vcmp.eq.s32.totalorder %v367, %v1657
        %vm1665 = vcmp.eq.s32.totalorder %v368, %v1657
        %vm1666 = vcmp.eq.s32.totalorder %v369, %v1657
        %vm1667 = vcmp.eq.s32.totalorder %v370, %v1657
        %vm1668 = vcmp.eq.s32.totalorder %v371, %v1657
        %vm1669 = vcmp.eq.s32.totalorder %v372, %v1657
        %vm1670 = vcmp.eq.s32.totalorder %v373, %v1657
        %vm1671 = vcmp.eq.s32.totalorder %v374, %v1657
        %vm1672 = vcmp.eq.s32.totalorder %v375, %v1657
        %vm1673 = vcmp.eq.s32.totalorder %v376, %v1657
        %v1674 = vsel %vm1658, 1.0, 0.0
        %v1675 = vsel %vm1659, 1.0, 0.0
        %v1676 = vsel %vm1660, 1.0, 0.0
        %v1677 = vsel %vm1661, 1.0, 0.0
        %v1678 = vsel %vm1662, 1.0, 0.0
        %v1679 = vsel %vm1663, 1.0, 0.0
        %v1680 = vsel %vm1664, 1.0, 0.0
        %v1681 = vsel %vm1665, 1.0, 0.0
        %v1682 = vsel %vm1666, 1.0, 0.0
        %v1683 = vsel %vm1667, 1.0, 0.0
        %v1684 = vsel %vm1668, 1.0, 0.0
        %v1685 = vsel %vm1669, 1.0, 0.0
        %v1686 = vsel %vm1670, 1.0, 0.0
        %v1687 = vsel %vm1671, 1.0, 0.0
        %v1688 = vsel %vm1672, 1.0, 0.0
        %v1689 = vsel %vm1673, 1.0, 0.0
        %v1690 = vlaneseq
        %v1691 = vshrl.u32 %v1690, 7
        %v1692 = vsub.s32 6, %v1691
        %v1693 = vrot.slane %v359, %v1692
        %vm1694 = vcmp.eq.s32.totalorder %v361, %v1693
        %vm1695 = vcmp.eq.s32.totalorder %v362, %v1693
        %vm1696 = vcmp.eq.s32.totalorder %v363, %v1693
        %vm1697 = vcmp.eq.s32.totalorder %v364, %v1693
        %vm1698 = vcmp.eq.s32.totalorder %v365, %v1693
        %vm1699 = vcmp.eq.s32.totalorder %v366, %v1693
        %vm1700 = vcmp.eq.s32.totalorder %v367, %v1693
        %vm1701 = vcmp.eq.s32.totalorder %v368, %v1693
        %vm1702 = vcmp.eq.s32.totalorder %v369, %v1693
        %vm1703 = vcmp.eq.s32.totalorder %v370, %v1693
        %vm1704 = vcmp.eq.s32.totalorder %v371, %v1693
        %vm1705 = vcmp.eq.s32.totalorder %v372, %v1693
        %vm1706 = vcmp.eq.s32.totalorder %v373, %v1693
        %vm1707 = vcmp.eq.s32.totalorder %v374, %v1693
        %vm1708 = vcmp.eq.s32.totalorder %v375, %v1693
        %vm1709 = vcmp.eq.s32.totalorder %v376, %v1693
        %v1710 = vsel %vm1694, 1.0, 0.0
        %v1711 = vsel %vm1695, 1.0, 0.0
        %v1712 = vsel %vm1696, 1.0, 0.0
        %v1713 = vsel %vm1697, 1.0, 0.0
        %v1714 = vsel %vm1698, 1.0, 0.0
        %v1715 = vsel %vm1699, 1.0, 0.0
        %v1716 = vsel %vm1700, 1.0, 0.0
        %v1717 = vsel %vm1701, 1.0, 0.0
        %v1718 = vsel %vm1702, 1.0, 0.0
        %v1719 = vsel %vm1703, 1.0, 0.0
        %v1720 = vsel %vm1704, 1.0, 0.0
        %v1721 = vsel %vm1705, 1.0, 0.0
        %v1722 = vsel %vm1706, 1.0, 0.0
        %v1723 = vsel %vm1707, 1.0, 0.0
        %v1724 = vsel %vm1708, 1.0, 0.0
        %v1725 = vsel %vm1709, 1.0, 0.0
        %1726 = vmatprep.subr.mxu0 0.0
        %1727 = vmatpush1.msra.mxu0 %v1710
        %1728 = vmatprep.subr.mxu0 0.0
        %1729 = vmatpush1.msra.mxu0 %v1711
        %1730 = vmatprep.subr.mxu0 0.0
        %1731 = vmatpush1.msra.mxu0 %v1712
        %1732 = vmatprep.subr.mxu0 0.0
        %1733 = vmatpush1.msra.mxu0 %v1713
        %1734 = vmatprep.subr.mxu0 0.0
        %1735 = vmatpush1.msra.mxu0 %v1714
        %1736 = vmatprep.subr.mxu0 0.0
        %1737 = vmatpush1.msra.mxu0 %v1715
        %1738 = vmatprep.subr.mxu0 0.0
        %1739 = vmatpush1.msra.mxu0 %v1716
        %1740 = vmatprep.subr.mxu0 0.0
        %1741 = vmatpush1.msra.mxu0 %v1717
        %1742 = vmatprep.subr.mxu0 0.0
        %1743 = vmatpush1.msra.mxu0 %v1718
        %1744 = vmatprep.subr.mxu0 0.0
        %1745 = vmatpush1.msra.mxu0 %v1719
        %1746 = vmatprep.subr.mxu0 0.0
        %1747 = vmatpush1.msra.mxu0 %v1720
        %1748 = vmatprep.subr.mxu0 0.0
        %1749 = vmatpush1.msra.mxu0 %v1721
        %1750 = vmatprep.subr.mxu0 0.0
        %1751 = vmatpush1.msra.mxu0 %v1722
        %1752 = vmatprep.subr.mxu0 0.0
        %1753 = vmatpush1.msra.mxu0 %v1723
        %1754 = vmatprep.subr.mxu0 0.0
        %1755 = vmatpush1.msra.mxu0 %v1724
        %1756 = vmatprep.subr.mxu0 0.0
        %1757 = vmatpush1.msra.mxu0 %v1725
        %1758 = vmatprep.subr.mxu0 0.0
        %1759 = vmatpush1.msra.mxu0 0.0
        %1760 = vmatprep.subr.mxu0 0.0
        %1761 = vmatpush1.msra.mxu0 0.0
        %1762 = vmatprep.subr.mxu0 0.0
        %1763 = vmatpush1.msra.mxu0 0.0
        %1764 = vmatprep.subr.mxu0 0.0
        %1765 = vmatpush1.msra.mxu0 0.0
        %1766 = vmatprep.subr.mxu0 0.0
        %1767 = vmatpush1.msra.mxu0 0.0
        %1768 = vmatprep.subr.mxu0 0.0
        %1769 = vmatpush1.msra.mxu0 0.0
        %1770 = vmatprep.subr.mxu0 0.0
        %1771 = vmatpush1.msra.mxu0 0.0
        %1772 = vmatprep.subr.mxu0 0.0
        %1773 = vmatpush1.msra.mxu0 0.0
        %1774 = vmatprep.subr.mxu0 0.0
        %1775 = vmatpush1.msra.mxu0 0.0
        %1776 = vmatprep.subr.mxu0 0.0
        %1777 = vmatpush1.msra.mxu0 0.0
        %1778 = vmatprep.subr.mxu0 0.0
        %1779 = vmatpush1.msra.mxu0 0.0
        %1780 = vmatprep.subr.mxu0 0.0
        %1781 = vmatpush1.msra.mxu0 0.0
        %1782 = vmatprep.subr.mxu0 0.0
        %1783 = vmatpush1.msra.mxu0 0.0
        %1784 = vmatprep.subr.mxu0 0.0
        %1785 = vmatpush1.msra.mxu0 0.0
        %1786 = vmatprep.subr.mxu0 0.0
        %1787 = vmatpush1.msra.mxu0 0.0
        %1788 = vmatprep.subr.mxu0 0.0
        %1789 = vmatpush1.msra.mxu0 0.0
        %1790 = vmatprep.mubr.f32.mxu0 0.0
        %1791 = vmatmul.mubr.f32.gmra.mrb[0].mxu0 %v357
        %v1792 = vpop.f32.mrb[0].mxu0
        %v1793 = vadd.f32 0.0, %v1792
        %v1794 = vpop.f32.mrb[0].mxu0
        %1795 = vdwg.mxu0
        %1796 = vmatprep.subr.mxu0 0.0
        %1797 = vmatpush1.msra.mxu0 %v1674
        %1798 = vmatprep.subr.mxu0 0.0
        %1799 = vmatpush1.msra.mxu0 %v1675
        %1800 = vmatprep.subr.mxu0 0.0
        %1801 = vmatpush1.msra.mxu0 %v1676
        %1802 = vmatprep.subr.mxu0 0.0
        %1803 = vmatpush1.msra.mxu0 %v1677
        %1804 = vmatprep.subr.mxu0 0.0
        %1805 = vmatpush1.msra.mxu0 %v1678
        %1806 = vmatprep.subr.mxu0 0.0
        %1807 = vmatpush1.msra.mxu0 %v1679
        %1808 = vmatprep.subr.mxu0 0.0
        %1809 = vmatpush1.msra.mxu0 %v1680
        %1810 = vmatprep.subr.mxu0 0.0
        %1811 = vmatpush1.msra.mxu0 %v1681
        %1812 = vmatprep.subr.mxu0 0.0
        %1813 = vmatpush1.msra.mxu0 %v1682
        %1814 = vmatprep.subr.mxu0 0.0
        %1815 = vmatpush1.msra.mxu0 %v1683
        %1816 = vmatprep.subr.mxu0 0.0
        %1817 = vmatpush1.msra.mxu0 %v1684
        %1818 = vmatprep.subr.mxu0 0.0
        %1819 = vmatpush1.msra.mxu0 %v1685
        %1820 = vmatprep.subr.mxu0 0.0
        %1821 = vmatpush1.msra.mxu0 %v1686
        %1822 = vmatprep.subr.mxu0 0.0
        %1823 = vmatpush1.msra.mxu0 %v1687
        %1824 = vmatprep.subr.mxu0 0.0
        %1825 = vmatpush1.msra.mxu0 %v1688
        %1826 = vmatprep.subr.mxu0 0.0
        %1827 = vmatpush1.msra.mxu0 %v1689
        %1828 = vmatprep.subr.mxu0 0.0
        %1829 = vmatpush1.msra.mxu0 0.0
        %1830 = vmatprep.subr.mxu0 0.0
        %1831 = vmatpush1.msra.mxu0 0.0
        %1832 = vmatprep.subr.mxu0 0.0
        %1833 = vmatpush1.msra.mxu0 0.0
        %1834 = vmatprep.subr.mxu0 0.0
        %1835 = vmatpush1.msra.mxu0 0.0
        %1836 = vmatprep.subr.mxu0 0.0
        %1837 = vmatpush1.msra.mxu0 0.0
        %1838 = vmatprep.subr.mxu0 0.0
        %1839 = vmatpush1.msra.mxu0 0.0
        %1840 = vmatprep.subr.mxu0 0.0
        %1841 = vmatpush1.msra.mxu0 0.0
        %1842 = vmatprep.subr.mxu0 0.0
        %1843 = vmatpush1.msra.mxu0 0.0
        %1844 = vmatprep.subr.mxu0 0.0
        %1845 = vmatpush1.msra.mxu0 0.0
        %1846 = vmatprep.subr.mxu0 0.0
        %1847 = vmatpush1.msra.mxu0 0.0
        %1848 = vmatprep.subr.mxu0 0.0
        %1849 = vmatpush1.msra.mxu0 0.0
        %1850 = vmatprep.subr.mxu0 0.0
        %1851 = vmatpush1.msra.mxu0 0.0
        %1852 = vmatprep.subr.mxu0 0.0
        %1853 = vmatpush1.msra.mxu0 0.0
        %1854 = vmatprep.subr.mxu0 0.0
        %1855 = vmatpush1.msra.mxu0 0.0
        %1856 = vmatprep.subr.mxu0 0.0
        %1857 = vmatpush1.msra.mxu0 0.0
        %1858 = vmatprep.subr.mxu0 0.0
        %1859 = vmatpush1.msra.mxu0 0.0
        %1860 = vmatprep.mubr.f32.mxu0 0.0
        %1861 = vmatmul.mubr.f32.gmra.mrb[0].mxu0 %v356
        %v1862 = vpop.f32.mrb[0].mxu0
        %v1863 = vadd.f32 %v1793, %v1862
        %v1864 = vpop.f32.mrb[0].mxu0
        %1865 = vdwg.mxu0
        %v1866 = vmax.f32 %v1653, %v1863
        %v1867 = vlaneseq
        %v1868 = vshrl.u32 %v1867, 7
        %v1869 = vsub.s32 7, %v1868
        %v1870 = vrot.slane %v358, %v1869
        %vm1871 = vcmp.eq.s32.totalorder %v361, %v1870
        %vm1872 = vcmp.eq.s32.totalorder %v362, %v1870
        %vm1873 = vcmp.eq.s32.totalorder %v363, %v1870
        %vm1874 = vcmp.eq.s32.totalorder %v364, %v1870
        %vm1875 = vcmp.eq.s32.totalorder %v365, %v1870
        %vm1876 = vcmp.eq.s32.totalorder %v366, %v1870
        %vm1877 = vcmp.eq.s32.totalorder %v367, %v1870
        %vm1878 = vcmp.eq.s32.totalorder %v368, %v1870
        %vm1879 = vcmp.eq.s32.totalorder %v369, %v1870
        %vm1880 = vcmp.eq.s32.totalorder %v370, %v1870
        %vm1881 = vcmp.eq.s32.totalorder %v371, %v1870
        %vm1882 = vcmp.eq.s32.totalorder %v372, %v1870
        %vm1883 = vcmp.eq.s32.totalorder %v373, %v1870
        %vm1884 = vcmp.eq.s32.totalorder %v374, %v1870
        %vm1885 = vcmp.eq.s32.totalorder %v375, %v1870
        %vm1886 = vcmp.eq.s32.totalorder %v376, %v1870
        %v1887 = vsel %vm1871, 1.0, 0.0
        %v1888 = vsel %vm1872, 1.0, 0.0
        %v1889 = vsel %vm1873, 1.0, 0.0
        %v1890 = vsel %vm1874, 1.0, 0.0
        %v1891 = vsel %vm1875, 1.0, 0.0
        %v1892 = vsel %vm1876, 1.0, 0.0
        %v1893 = vsel %vm1877, 1.0, 0.0
        %v1894 = vsel %vm1878, 1.0, 0.0
        %v1895 = vsel %vm1879, 1.0, 0.0
        %v1896 = vsel %vm1880, 1.0, 0.0
        %v1897 = vsel %vm1881, 1.0, 0.0
        %v1898 = vsel %vm1882, 1.0, 0.0
        %v1899 = vsel %vm1883, 1.0, 0.0
        %v1900 = vsel %vm1884, 1.0, 0.0
        %v1901 = vsel %vm1885, 1.0, 0.0
        %v1902 = vsel %vm1886, 1.0, 0.0
        %v1903 = vlaneseq
        %v1904 = vshrl.u32 %v1903, 7
        %v1905 = vsub.s32 7, %v1904
        %v1906 = vrot.slane %v359, %v1905
        %vm1907 = vcmp.eq.s32.totalorder %v361, %v1906
        %vm1908 = vcmp.eq.s32.totalorder %v362, %v1906
        %vm1909 = vcmp.eq.s32.totalorder %v363, %v1906
        %vm1910 = vcmp.eq.s32.totalorder %v364, %v1906
        %vm1911 = vcmp.eq.s32.totalorder %v365, %v1906
        %vm1912 = vcmp.eq.s32.totalorder %v366, %v1906
        %vm1913 = vcmp.eq.s32.totalorder %v367, %v1906
        %vm1914 = vcmp.eq.s32.totalorder %v368, %v1906
        %vm1915 = vcmp.eq.s32.totalorder %v369, %v1906
        %vm1916 = vcmp.eq.s32.totalorder %v370, %v1906
        %vm1917 = vcmp.eq.s32.totalorder %v371, %v1906
        %vm1918 = vcmp.eq.s32.totalorder %v372, %v1906
        %vm1919 = vcmp.eq.s32.totalorder %v373, %v1906
        %vm1920 = vcmp.eq.s32.totalorder %v374, %v1906
        %vm1921 = vcmp.eq.s32.totalorder %v375, %v1906
        %vm1922 = vcmp.eq.s32.totalorder %v376, %v1906
        %v1923 = vsel %vm1907, 1.0, 0.0
        %v1924 = vsel %vm1908, 1.0, 0.0
        %v1925 = vsel %vm1909, 1.0, 0.0
        %v1926 = vsel %vm1910, 1.0, 0.0
        %v1927 = vsel %vm1911, 1.0, 0.0
        %v1928 = vsel %vm1912, 1.0, 0.0
        %v1929 = vsel %vm1913, 1.0, 0.0
        %v1930 = vsel %vm1914, 1.0, 0.0
        %v1931 = vsel %vm1915, 1.0, 0.0
        %v1932 = vsel %vm1916, 1.0, 0.0
        %v1933 = vsel %vm1917, 1.0, 0.0
        %v1934 = vsel %vm1918, 1.0, 0.0
        %v1935 = vsel %vm1919, 1.0, 0.0
        %v1936 = vsel %vm1920, 1.0, 0.0
        %v1937 = vsel %vm1921, 1.0, 0.0
        %v1938 = vsel %vm1922, 1.0, 0.0
        %1939 = vmatprep.subr.mxu0 0.0
        %1940 = vmatpush1.msra.mxu0 %v1923
        %1941 = vmatprep.subr.mxu0 0.0
        %1942 = vmatpush1.msra.mxu0 %v1924
        %1943 = vmatprep.subr.mxu0 0.0
        %1944 = vmatpush1.msra.mxu0 %v1925
        %1945 = vmatprep.subr.mxu0 0.0
        %1946 = vmatpush1.msra.mxu0 %v1926
        %1947 = vmatprep.subr.mxu0 0.0
        %1948 = vmatpush1.msra.mxu0 %v1927
        %1949 = vmatprep.subr.mxu0 0.0
        %1950 = vmatpush1.msra.mxu0 %v1928
        %1951 = vmatprep.subr.mxu0 0.0
        %1952 = vmatpush1.msra.mxu0 %v1929
        %1953 = vmatprep.subr.mxu0 0.0
        %1954 = vmatpush1.msra.mxu0 %v1930
        %1955 = vmatprep.subr.mxu0 0.0
        %1956 = vmatpush1.msra.mxu0 %v1931
        %1957 = vmatprep.subr.mxu0 0.0
        %1958 = vmatpush1.msra.mxu0 %v1932
        %1959 = vmatprep.subr.mxu0 0.0
        %1960 = vmatpush1.msra.mxu0 %v1933
        %1961 = vmatprep.subr.mxu0 0.0
        %1962 = vmatpush1.msra.mxu0 %v1934
        %1963 = vmatprep.subr.mxu0 0.0
        %1964 = vmatpush1.msra.mxu0 %v1935
        %1965 = vmatprep.subr.mxu0 0.0
        %1966 = vmatpush1.msra.mxu0 %v1936
        %1967 = vmatprep.subr.mxu0 0.0
        %1968 = vmatpush1.msra.mxu0 %v1937
        %1969 = vmatprep.subr.mxu0 0.0
        %1970 = vmatpush1.msra.mxu0 %v1938
        %1971 = vmatprep.subr.mxu0 0.0
        %1972 = vmatpush1.msra.mxu0 0.0
        %1973 = vmatprep.subr.mxu0 0.0
        %1974 = vmatpush1.msra.mxu0 0.0
        %1975 = vmatprep.subr.mxu0 0.0
        %1976 = vmatpush1.msra.mxu0 0.0
        %1977 = vmatprep.subr.mxu0 0.0
        %1978 = vmatpush1.msra.mxu0 0.0
        %1979 = vmatprep.subr.mxu0 0.0
        %1980 = vmatpush1.msra.mxu0 0.0
        %1981 = vmatprep.subr.mxu0 0.0
        %1982 = vmatpush1.msra.mxu0 0.0
        %1983 = vmatprep.subr.mxu0 0.0
        %1984 = vmatpush1.msra.mxu0 0.0
        %1985 = vmatprep.subr.mxu0 0.0
        %1986 = vmatpush1.msra.mxu0 0.0
        %1987 = vmatprep.subr.mxu0 0.0
        %1988 = vmatpush1.msra.mxu0 0.0
        %1989 = vmatprep.subr.mxu0 0.0
        %1990 = vmatpush1.msra.mxu0 0.0
        %1991 = vmatprep.subr.mxu0 0.0
        %1992 = vmatpush1.msra.mxu0 0.0
        %1993 = vmatprep.subr.mxu0 0.0
        %1994 = vmatpush1.msra.mxu0 0.0
        %1995 = vmatprep.subr.mxu0 0.0
        %1996 = vmatpush1.msra.mxu0 0.0
        %1997 = vmatprep.subr.mxu0 0.0
        %1998 = vmatpush1.msra.mxu0 0.0
        %1999 = vmatprep.subr.mxu0 0.0
        %2000 = vmatpush1.msra.mxu0 0.0
        %2001 = vmatprep.subr.mxu0 0.0
        %2002 = vmatpush1.msra.mxu0 0.0
        %2003 = vmatprep.mubr.f32.mxu0 0.0
        %2004 = vmatmul.mubr.f32.gmra.mrb[0].mxu0 %v357
        %v2005 = vpop.f32.mrb[0].mxu0
        %v2006 = vadd.f32 0.0, %v2005
        %v2007 = vpop.f32.mrb[0].mxu0
        %2008 = vdwg.mxu0
        %2009 = vmatprep.subr.mxu0 0.0
        %2010 = vmatpush1.msra.mxu0 %v1887
        %2011 = vmatprep.subr.mxu0 0.0
        %2012 = vmatpush1.msra.mxu0 %v1888
        %2013 = vmatprep.subr.mxu0 0.0
        %2014 = vmatpush1.msra.mxu0 %v1889
        %2015 = vmatprep.subr.mxu0 0.0
        %2016 = vmatpush1.msra.mxu0 %v1890
        %2017 = vmatprep.subr.mxu0 0.0
        %2018 = vmatpush1.msra.mxu0 %v1891
        %2019 = vmatprep.subr.mxu0 0.0
        %2020 = vmatpush1.msra.mxu0 %v1892
        %2021 = vmatprep.subr.mxu0 0.0
        %2022 = vmatpush1.msra.mxu0 %v1893
        %2023 = vmatprep.subr.mxu0 0.0
        %2024 = vmatpush1.msra.mxu0 %v1894
        %2025 = vmatprep.subr.mxu0 0.0
        %2026 = vmatpush1.msra.mxu0 %v1895
        %2027 = vmatprep.subr.mxu0 0.0
        %2028 = vmatpush1.msra.mxu0 %v1896
        %2029 = vmatprep.subr.mxu0 0.0
        %2030 = vmatpush1.msra.mxu0 %v1897
        %2031 = vmatprep.subr.mxu0 0.0
        %2032 = vmatpush1.msra.mxu0 %v1898
        %2033 = vmatprep.subr.mxu0 0.0
        %2034 = vmatpush1.msra.mxu0 %v1899
        %2035 = vmatprep.subr.mxu0 0.0
        %2036 = vmatpush1.msra.mxu0 %v1900
        %2037 = vmatprep.subr.mxu0 0.0
        %2038 = vmatpush1.msra.mxu0 %v1901
        %2039 = vmatprep.subr.mxu0 0.0
        %2040 = vmatpush1.msra.mxu0 %v1902
        %2041 = vmatprep.subr.mxu0 0.0
        %2042 = vmatpush1.msra.mxu0 0.0
        %2043 = vmatprep.subr.mxu0 0.0
        %2044 = vmatpush1.msra.mxu0 0.0
        %2045 = vmatprep.subr.mxu0 0.0
        %2046 = vmatpush1.msra.mxu0 0.0
        %2047 = vmatprep.subr.mxu0 0.0
        %2048 = vmatpush1.msra.mxu0 0.0
        %2049 = vmatprep.subr.mxu0 0.0
        %2050 = vmatpush1.msra.mxu0 0.0
        %2051 = vmatprep.subr.mxu0 0.0
        %2052 = vmatpush1.msra.mxu0 0.0
        %2053 = vmatprep.subr.mxu0 0.0
        %2054 = vmatpush1.msra.mxu0 0.0
        %2055 = vmatprep.subr.mxu0 0.0
        %2056 = vmatpush1.msra.mxu0 0.0
        %2057 = vmatprep.subr.mxu0 0.0
        %2058 = vmatpush1.msra.mxu0 0.0
        %2059 = vmatprep.subr.mxu0 0.0
        %2060 = vmatpush1.msra.mxu0 0.0
        %2061 = vmatprep.subr.mxu0 0.0
        %2062 = vmatpush1.msra.mxu0 0.0
        %2063 = vmatprep.subr.mxu0 0.0
        %2064 = vmatpush1.msra.mxu0 0.0
        %2065 = vmatprep.subr.mxu0 0.0
        %2066 = vmatpush1.msra.mxu0 0.0
        %2067 = vmatprep.subr.mxu0 0.0
        %2068 = vmatpush1.msra.mxu0 0.0
        %2069 = vmatprep.subr.mxu0 0.0
        %2070 = vmatpush1.msra.mxu0 0.0
        %2071 = vmatprep.subr.mxu0 0.0
        %2072 = vmatpush1.msra.mxu0 0.0
        %2073 = vmatprep.mubr.f32.mxu0 0.0
        %2074 = vmatmul.mubr.f32.gmra.mrb[0].mxu0 %v356
        %v2075 = vpop.f32.mrb[0].mxu0
        %v2076 = vadd.f32 %v2006, %v2075
        %v2077 = vpop.f32.mrb[0].mxu0
        %2078 = vdwg.mxu0
        %v2079 = vmax.f32 %v1866, %v2076
        %v2080 = vld [vmem:[%s4] sm:$0xff]
        %2082 = vset.pattern.permute.xlu0 0
        %2083 = vperm.xlu0 %2082, %v2080
        %v2084 = vpop.permute.xlu0 %2083
        %v2086 = vadd.f32 %v2079, %v2084
        %v2087 = vmax.f32 %v2086, 0.0
        %2088 = vst [vmem:[%s348] sm:$0xff] %v2087
        %s2089 = sand.u32 %s176, 1
        %s2090 = scalar_lea.sflag [#allocation4], %s2089
        %s2091 = sand.u32 %s176, 1
        %s2092 = smul.addr %s2091, 8
        %s2093 = scalar_lea.vmem [#allocation8], %s2092
        // Predicated region
        $region53: #{tpu_custom_call.1} parent=39 // pred_check
          %p2094 = pneg %p186
        $region54: #{tpu_custom_call.1} parent=39 // pred_check_branch
          %2096 = sbr.rel (%p2094) target = $region56
        $region55: #{tpu_custom_call.1} parent=39 // pred_region
          %s2098 = ssub.s32 128, 128
          %2099 = vsyncadd %s2090, %s2098
          %s2100 = sadd.s32 %s30, %s29
          %s2101 = smul.addr %s2100, 128
          %s2102 = scalar_lea.hbm %s5, %s2101
          %s2104 = sshll.u32 %s2093, 4
          %s2105 = int_to_ptr.vmem [resolvable:$true] %s2104
          %2107 = dma.vmem_to_hbm [thread:$0]  %s2105, 128, %s2102, %s2090
        $region56: #{tpu_custom_call.1} parent=39 // pred_fallthru
          _
      $region40: #{tpu_custom_call.1} parent=5 // pred_fallthru
        _
      %p2108 = scmp.le.s32.totalorder 2, %s20
      // Predicated region
      $region57: #{tpu_custom_call.1} parent=5 // pred_check
        %p2109 = pneg %p2108
      $region58: #{tpu_custom_call.1} parent=5 // pred_check_branch
        %2111 = sbr.rel (%p2109) target = $region60
      $region59: #{tpu_custom_call.1} parent=5 // pred_region
        %s2112 = ssub.s32 %s20, 2
        // Predicated region
        $region61: #{tpu_custom_call.1} parent=59 // pred_check
          %p2113 = pneg %p192
        $region62: #{tpu_custom_call.1} parent=59 // pred_check_branch
          %2115 = sbr.rel (%p2113) target = $region64
        $region63: #{tpu_custom_call.1} parent=59 // pred_region
          %s2116 = sand.u32 %s177, 1
          %s2117 = scalar_lea.sflag [#allocation4], %s2116
          %s2118 = sand.u32 %s177, 1
          %s2119 = smul.addr %s2118, 8
          %s2120 = scalar_lea.vmem [#allocation8], %s2119
          %2121 = dma.done %s2117, 128
        $region64: #{tpu_custom_call.1} parent=59 // pred_fallthru
          _
      $region60: #{tpu_custom_call.1} parent=5 // pred_fallthru
        _
    $region6: #{tpu_custom_call.1} parent=1 // loop_footer
      %s24 = sadd.s32 1, %s20
    $region7: #{tpu_custom_call.1} parent=1 // loop_footer_branch
      %19 = sbr.rel target = $region3
    $region8: #{tpu_custom_call.1} parent=1 // loop_exit
      _
    %2122 = vsyncpa [#allocation3], 1
    %s2123 = scalar_lea.sflag [#allocation3], 1
    %2124 = vsyncpa %s2123, 1
    %2125 = vsyncpa [#allocation6], 1
    %s2126 = scalar_lea.sflag [#allocation6], 1
    %2127 = vsyncpa %s2126, 1
    %2128 = vsyncpa [#allocation4], 1
    %s2129 = scalar_lea.sflag [#allocation4], 1
    %2130 = vsyncpa %s2129, 1

</llo_original>
